<compile_context>
chip_gen: v6e
topology: v6e:2x2x1
jax: 0.10.0
libtpu: 0.0.40
codegen_flags: <defaults>
</compile_context>

<pallas_src>
import math

import jax
import jax.numpy as jnp
from jax.experimental import pallas as pl
from jax.experimental.pallas import tpu as pltpu

LR_MULT = 0.1
NUM_K = 3          # num_kernels
KH = KW = 3        # kernel_size
ROW_GROUP = NUM_K * 8   # 24 rows: channel pattern (3) x sublane tile (8)


# ----------------------------------------------------------------------------
# Parameter construction (mirrors LiteGabor2.__init__)
# ----------------------------------------------------------------------------
def _gabor_kernel(theta, sigma=2.0, lam=3.0, gamma=0.5, kernel_size=3):
    r = (kernel_size - 1) // 2
    coords = jnp.arange(-r, r + 1, dtype=jnp.float32)
    y, x = jnp.meshgrid(coords, coords, indexing="ij")
    xr = x * math.cos(theta) + y * math.sin(theta)
    yr = -x * math.sin(theta) + y * math.cos(theta)
    return jnp.exp(-(xr ** 2 + gamma ** 2 * yr ** 2) / (2.0 * sigma ** 2)) * jnp.cos(
        2.0 * math.pi * xr / lam
    )


def make_params(num_kernels=NUM_K, kernel_size=KH):
    ks = jnp.stack(
        [_gabor_kernel(math.pi * i / num_kernels, kernel_size=kernel_size)
         for i in range(num_kernels)]
    )                                                         # (3, 3, 3)
    weight = ks[:, None, :, :].astype(jnp.float32)            # (3, 1, 3, 3)
    gate_weight = jnp.ones((num_kernels, 1, 1), jnp.float32)  # torch.ones(3, 1, 1)
    return weight, gate_weight


# ----------------------------------------------------------------------------
# Wrapper-side folding: (lr_mult * tap) x halo-validity mask, per channel/pos
# ----------------------------------------------------------------------------
def _fold_weights_and_masks(weight, lr_mult, h, w, hw_pad):
    """(9, 3, hw_pad): tap t, channel c, flat position f -> weight[c,t]*lr_mult if
    the source pixel for tap t at f is in-bounds, else 0 (pad lanes are all 0)."""
    hw = h * w
    w_flat = weight.reshape(NUM_K, KH * KW).astype(jnp.float32) * lr_mult   # (3, 9)
    r = jnp.arange(h, dtype=jnp.int32).reshape(h, 1)
    c = jnp.arange(w, dtype=jnp.int32).reshape(1, w)
    masks = []
    for di in (-1, 0, 1):
        for dj in (-1, 0, 1):
            valid = (r + di >= 0) & (r + di < h) & (c + dj >= 0) & (c + dj < w)
            masks.append(valid.astype(jnp.float32).reshape(hw))
    m = jnp.stack(masks)                                      # (9, hw)
    wm = w_flat.T[:, :, None] * m[:, None, :]                 # (9, 3, hw)
    return jnp.pad(wm, ((0, 0), (0, 0), (0, hw_pad - hw)))    # (9, 3, hw_pad)


def _round_up(x, m):
    return ((x + m - 1) // m) * m


def _choose_groups_per_step(n_groups, hw_pad):
    """Groups of 24 rows handled per grid step."""
    mem_cap = max(1, (1 << 20) // (ROW_GROUP * hw_pad * 4))   # ~1 MiB x-block
    cap = min(n_groups, mem_cap, 16)                          # 16 bounds kernel unroll
    if n_groups > 1:
        cap = min(cap, -(-n_groups // 2))                     # keep >= 2 steps (v7x megacore)
    cap = max(cap, 1)
    for g in range(cap, 0, -1):                               # divisor -> even grid
        if n_groups % g == 0:
            return g
    return 1


def _tree_sum(terms):
    while len(terms) > 1:
        nxt = [terms[i] + terms[i + 1] for i in range(0, len(terms) - 1, 2)]
        if len(terms) % 2:
            nxt.append(terms[-1])
        terms = nxt
    return terms[0]


# ----------------------------------------------------------------------------
# Pallas kernel: g_blk groups of 24 rows x hw_pad lanes per grid step
# ----------------------------------------------------------------------------
def _make_kernel(h, w, hw_pad, g_blk):
    hw = h * w
    inv_n = 1.0 / hw
    # torch's unbiased variance is NaN when N == 1; keep that behaviour.
    inv_nm1 = 1.0 / (hw - 1) if hw > 1 else float("nan")
    n_lane_pad = float(hw_pad - hw)

    # tap t = (di+1)*3 + (dj+1); source pixel sits at flat offset di*w+dj, realized
    # as a static lane roll (non-negative shift); halo masks folded into wm kill
    # any wrap-around / cross-row contamination.
    taps = []
    for di in (-1, 0, 1):
        for dj in (-1, 0, 1):
            t = (di + 1) * KW + (dj + 1)
            taps.append((t, (-(di * w + dj)) % hw_pad))

    def kernel(wm_ref, gate_ref, x_ref, o_ref):
        # wm_ref:   (9, 24, hw_pad) f32 VMEM  (weight*lr_mult folded with halo masks)
        # gate_ref: (24, 1)         f32 VMEM  (sigmoid(gate_weight), per row)
        # x_ref:    (g_blk, 24, hw_pad) f32 VMEM
        # o_ref:    (g_blk, 24, hw_pad) f32 VMEM
        gate = gate_ref[...]                               # (24, 1)
        wm_taps = [wm_ref[t] for t, _ in taps]             # hoisted: 9 x (24, hw_pad)

        for g in range(g_blk):                             # static unroll, g_blk <= 16
            x = x_ref[g]                                   # (24, hw_pad)

            # Depthwise 3x3 cross-correlation: 8 lane rolls + masked taps, tree-add.
            terms = []
            for idx, (t, shift) in enumerate(taps):
                src = x if shift == 0 else pltpu.roll(x, shift, axis=1)
                terms.append(src * wm_taps[idx])
            acc = _tree_sum(terms)                         # (24, hw_pad) f32

            # Two-pass unbiased per-row spatial variance over the true H*W lanes.
            # Pad lanes hold acc == 0; subtract their (0 - mean)^2 contribution exactly.
            mean = jnp.sum(acc, axis=-1, keepdims=True) * inv_n     # (24, 1)
            d = acc - mean
            s2 = jnp.sum(d * d, axis=-1, keepdims=True)             # (24, 1)
            var = (s2 - n_lane_pad * mean * mean) * inv_nm1         # (24, 1)

            dyn_gate = gate * (1.0 - var)                           # (24, 1)
            # (f32 output matches the PyTorch module; cast here if bf16 out is wanted)
            o_ref[g] = (acc * dyn_gate).astype(o_ref.dtype)

    return kernel


# ----------------------------------------------------------------------------
# Forward wrapper (keep under jit so channel select / reshape / pad fuse)
# ----------------------------------------------------------------------------
def lite_gabor2_forward(x, weight, gate_weight, lr_mult=LR_MULT):
    b, c, h, w = x.shape
    if c < NUM_K:
        reps = (NUM_K + c - 1) // c
        x = jnp.tile(x, (1, reps, 1, 1))[:, :NUM_K]
    elif c > NUM_K:
        x = x[:, :NUM_K]
    x = x.astype(jnp.float32)

    hw = h * w
    hw_pad = max(_round_up(hw, 128), 128)          # lane-dense spatial axis
    rows = b * NUM_K
    n_groups = -(-rows // ROW_GROUP)               # ceil: groups of 24 rows
    rows_pad = n_groups * ROW_GROUP
    g_blk = _choose_groups_per_step(n_groups, hw_pad)

    x_rows = x.reshape(rows, hw)
    x_rows = jnp.pad(x_rows, ((0, rows_pad - rows), (0, hw_pad - hw)))
    x_g = x_rows.reshape(n_groups, ROW_GROUP, hw_pad)

    wm = _fold_weights_and_masks(weight, lr_mult, h, w, hw_pad)   # (9, 3, hw_pad)
    wm = jnp.tile(wm, (1, ROW_GROUP // NUM_K, 1))                 # (9, 24, hw_pad)
    gate = jax.nn.sigmoid(gate_weight.astype(jnp.float32)).reshape(NUM_K, 1)
    gate = jnp.tile(gate, (ROW_GROUP // NUM_K, 1))                # (24, 1)

    out_g = pl.pallas_call(
        _make_kernel(h, w, hw_pad, g_blk),
        out_shape=jax.ShapeDtypeStruct((n_groups, ROW_GROUP, hw_pad), jnp.float32),
        grid_spec=pltpu.PrefetchScalarGridSpec(
            num_scalar_prefetch=0,
            grid=(n_groups // g_blk,),
            in_specs=[
                # constant index maps -> fetched once, stay resident across steps
                pl.BlockSpec((KH * KW, ROW_GROUP, hw_pad), lambda i: (0, 0, 0)),
                pl.BlockSpec((ROW_GROUP, 1), lambda i: (0, 0)),
                pl.BlockSpec((g_blk, ROW_GROUP, hw_pad), lambda i: (i, 0, 0)),
            ],
            out_specs=pl.BlockSpec((g_blk, ROW_GROUP, hw_pad), lambda i: (i, 0, 0)),
        ),
        compiler_params=pltpu.CompilerParams(
            dimension_semantics=("parallel",),
        ),
    )(wm, gate, x_g)

    out = out_g.reshape(rows_pad, hw_pad)[:rows, :hw]
    return out.reshape(b, NUM_K, h, w)


# ----------------------------------------------------------------------------
# Pure-JAX reference for validation
# ----------------------------------------------------------------------------
def lite_gabor2_ref(x, weight, gate_weight, lr_mult=LR_MULT):
    b, c, h, w = x.shape
    if c < NUM_K:
        reps = (NUM_K + c - 1) // c
        x = jnp.tile(x, (1, reps, 1, 1))[:, :NUM_K]
    elif c > NUM_K:
        x = x[:, :NUM_K]
    x = x.astype(jnp.float32)
    wk = weight.astype(jnp.float32) * lr_mult                 # (3, 1, 3, 3)
    feats = jax.lax.conv_general_dilated(
        x, wk, window_strides=(1, 1), padding=((1, 1), (1, 1)),
        dimension_numbers=("NCHW", "OIHW", "NCHW"), feature_group_count=NUM_K,
        precision=jax.lax.Precision.HIGHEST,
    )
    noise = jnp.var(feats, axis=(2, 3), keepdims=True, ddof=1)
    gate = jax.nn.sigmoid(gate_weight.astype(jnp.float32))    # (3, 1, 1)
    return feats * (gate * (1.0 - noise))


if __name__ == "__main__":
    key = jax.random.PRNGKey(0)
    x = jax.random.normal(key, (2, 4, 16, 16), dtype=jnp.float32)  # c > num_kernels branch

    weight, gate_weight = make_params()

    fwd = jax.jit(lite_gabor2_forward)
    out = jax.block_until_ready(fwd(x, weight, gate_weight))

    ref = lite_gabor2_ref(x, weight, gate_weight)
    assert out.shape == ref.shape == (2, 3, 16, 16)
    assert jnp.allclose(out, ref, atol=1e-4, rtol=1e-4), "mismatch vs JAX reference"

    print("KERNEL_OK")
</pallas_src>

<mosaic_0001>
module attributes {stable_mosaic.version = 11 : i64} {
  func.func @kernel(%arg0: i32, %arg1: memref<9x24x256xf32, #tpu.memory_space<vmem>>, %arg2: memref<24x1xf32, #tpu.memory_space<vmem>>, %arg3: memref<1x24x256xf32, #tpu.memory_space<vmem>>, %arg4: memref<1x24x256xf32, #tpu.memory_space<vmem>>) attributes {dimension_semantics = [#tpu.dimension_semantics<parallel>], iteration_bounds = array<i64: 1>, scalar_prefetch = 0 : i64, scratch_operands = 0 : i64, tpu.core_type = #tpu.core_type<tc>, window_params = [{pipeline_mode = #tpu.pipeline_mode<synchronous>, transform_indices = @transform_0, window_bounds = array<i64: 9, 24, 256>}, {pipeline_mode = #tpu.pipeline_mode<synchronous>, transform_indices = @transform_1, window_bounds = array<i64: 24, 1>}, {transform_indices = @transform_2, window_bounds = array<i64: 1, 24, 256>}, {transform_indices = @transform_3, window_bounds = array<i64: 1, 24, 256>}]} {
    %c0 = arith.constant 0 : index
    %c0_0 = arith.constant 0 : index
    %0 = vector.load %arg2[%c0, %c0_0] : memref<24x1xf32, #tpu.memory_space<vmem>>, vector<24x1xf32>
    %c0_1 = arith.constant 0 : index
    %c0_2 = arith.constant 0 : index
    %c0_3 = arith.constant 0 : index
    %1 = vector.load %arg1[%c0_1, %c0_2, %c0_3] : memref<9x24x256xf32, #tpu.memory_space<vmem>>, vector<1x24x256xf32>
    %2 = vector.shape_cast %1 : vector<1x24x256xf32> to vector<24x256xf32>
    %c1 = arith.constant 1 : index
    %c0_4 = arith.constant 0 : index
    %c0_5 = arith.constant 0 : index
    %3 = vector.load %arg1[%c1, %c0_4, %c0_5] : memref<9x24x256xf32, #tpu.memory_space<vmem>>, vector<1x24x256xf32>
    %4 = vector.shape_cast %3 : vector<1x24x256xf32> to vector<24x256xf32>
    %c2 = arith.constant 2 : index
    %c0_6 = arith.constant 0 : index
    %c0_7 = arith.constant 0 : index
    %5 = vector.load %arg1[%c2, %c0_6, %c0_7] : memref<9x24x256xf32, #tpu.memory_space<vmem>>, vector<1x24x256xf32>
    %6 = vector.shape_cast %5 : vector<1x24x256xf32> to vector<24x256xf32>
    %c3 = arith.constant 3 : index
    %c0_8 = arith.constant 0 : index
    %c0_9 = arith.constant 0 : index
    %7 = vector.load %arg1[%c3, %c0_8, %c0_9] : memref<9x24x256xf32, #tpu.memory_space<vmem>>, vector<1x24x256xf32>
    %8 = vector.shape_cast %7 : vector<1x24x256xf32> to vector<24x256xf32>
    %c4 = arith.constant 4 : index
    %c0_10 = arith.constant 0 : index
    %c0_11 = arith.constant 0 : index
    %9 = vector.load %arg1[%c4, %c0_10, %c0_11] : memref<9x24x256xf32, #tpu.memory_space<vmem>>, vector<1x24x256xf32>
    %10 = vector.shape_cast %9 : vector<1x24x256xf32> to vector<24x256xf32>
    %c5 = arith.constant 5 : index
    %c0_12 = arith.constant 0 : index
    %c0_13 = arith.constant 0 : index
    %11 = vector.load %arg1[%c5, %c0_12, %c0_13] : memref<9x24x256xf32, #tpu.memory_space<vmem>>, vector<1x24x256xf32>
    %12 = vector.shape_cast %11 : vector<1x24x256xf32> to vector<24x256xf32>
    %c6 = arith.constant 6 : index
    %c0_14 = arith.constant 0 : index
    %c0_15 = arith.constant 0 : index
    %13 = vector.load %arg1[%c6, %c0_14, %c0_15] : memref<9x24x256xf32, #tpu.memory_space<vmem>>, vector<1x24x256xf32>
    %14 = vector.shape_cast %13 : vector<1x24x256xf32> to vector<24x256xf32>
    %c7 = arith.constant 7 : index
    %c0_16 = arith.constant 0 : index
    %c0_17 = arith.constant 0 : index
    %15 = vector.load %arg1[%c7, %c0_16, %c0_17] : memref<9x24x256xf32, #tpu.memory_space<vmem>>, vector<1x24x256xf32>
    %16 = vector.shape_cast %15 : vector<1x24x256xf32> to vector<24x256xf32>
    %c8 = arith.constant 8 : index
    %c0_18 = arith.constant 0 : index
    %c0_19 = arith.constant 0 : index
    %17 = vector.load %arg1[%c8, %c0_18, %c0_19] : memref<9x24x256xf32, #tpu.memory_space<vmem>>, vector<1x24x256xf32>
    %18 = vector.shape_cast %17 : vector<1x24x256xf32> to vector<24x256xf32>
    %c0_20 = arith.constant 0 : index
    %c0_21 = arith.constant 0 : index
    %c0_22 = arith.constant 0 : index
    %19 = vector.load %arg3[%c0_20, %c0_21, %c0_22] : memref<1x24x256xf32, #tpu.memory_space<vmem>>, vector<1x24x256xf32>
    %20 = vector.shape_cast %19 : vector<1x24x256xf32> to vector<24x256xf32>
    %c17_i32 = arith.constant 17 : i32
    %21 = tpu.dynamic_rotate %20 by %c17_i32 dim 1 : vector<24x256xf32>, i32 -> vector<24x256xf32>
    %22 = arith.mulf %21, %2 : vector<24x256xf32>
    %c16_i32 = arith.constant 16 : i32
    %23 = tpu.dynamic_rotate %20 by %c16_i32 dim 1 : vector<24x256xf32>, i32 -> vector<24x256xf32>
    %24 = arith.mulf %23, %4 : vector<24x256xf32>
    %c15_i32 = arith.constant 15 : i32
    %25 = tpu.dynamic_rotate %20 by %c15_i32 dim 1 : vector<24x256xf32>, i32 -> vector<24x256xf32>
    %26 = arith.mulf %25, %6 : vector<24x256xf32>
    %c1_i32 = arith.constant 1 : i32
    %27 = tpu.dynamic_rotate %20 by %c1_i32 dim 1 : vector<24x256xf32>, i32 -> vector<24x256xf32>
    %28 = arith.mulf %27, %8 : vector<24x256xf32>
    %29 = arith.mulf %20, %10 : vector<24x256xf32>
    %c255_i32 = arith.constant 255 : i32
    %30 = tpu.dynamic_rotate %20 by %c255_i32 dim 1 : vector<24x256xf32>, i32 -> vector<24x256xf32>
    %31 = arith.mulf %30, %12 : vector<24x256xf32>
    %c241_i32 = arith.constant 241 : i32
    %32 = tpu.dynamic_rotate %20 by %c241_i32 dim 1 : vector<24x256xf32>, i32 -> vector<24x256xf32>
    %33 = arith.mulf %32, %14 : vector<24x256xf32>
    %c240_i32 = arith.constant 240 : i32
    %34 = tpu.dynamic_rotate %20 by %c240_i32 dim 1 : vector<24x256xf32>, i32 -> vector<24x256xf32>
    %35 = arith.mulf %34, %16 : vector<24x256xf32>
    %c239_i32 = arith.constant 239 : i32
    %36 = tpu.dynamic_rotate %20 by %c239_i32 dim 1 : vector<24x256xf32>, i32 -> vector<24x256xf32>
    %37 = arith.mulf %36, %18 : vector<24x256xf32>
    %38 = arith.addf %22, %24 : vector<24x256xf32>
    %39 = arith.addf %26, %28 : vector<24x256xf32>
    %40 = arith.addf %29, %31 : vector<24x256xf32>
    %41 = arith.addf %33, %35 : vector<24x256xf32>
    %42 = arith.addf %38, %39 : vector<24x256xf32>
    %43 = arith.addf %40, %41 : vector<24x256xf32>
    %44 = arith.addf %42, %43 : vector<24x256xf32>
    %45 = arith.addf %44, %37 : vector<24x256xf32>
    %cst = arith.constant dense<0.000000e+00> : vector<24xf32>
    %46 = vector.multi_reduction <add>, %45, %cst [1] : vector<24x256xf32> to vector<24xf32>
    %47 = vector.shape_cast %46 : vector<24xf32> to vector<24x1xf32>
    %cst_23 = arith.constant 3.906250e-03 : f32
    %48 = vector.broadcast %cst_23 : f32 to vector<24x1xf32>
    %49 = arith.mulf %47, %48 : vector<24x1xf32>
    %50 = vector.broadcast %49 : vector<24x1xf32> to vector<24x256xf32>
    %51 = arith.subf %45, %50 : vector<24x256xf32>
    %52 = arith.mulf %51, %51 : vector<24x256xf32>
    %cst_24 = arith.constant dense<0.000000e+00> : vector<24xf32>
    %53 = vector.multi_reduction <add>, %52, %cst_24 [1] : vector<24x256xf32> to vector<24xf32>
    %54 = vector.shape_cast %53 : vector<24xf32> to vector<24x1xf32>
    %cst_25 = arith.constant 0.000000e+00 : f32
    %55 = vector.broadcast %cst_25 : f32 to vector<24x1xf32>
    %56 = arith.mulf %55, %49 : vector<24x1xf32>
    %57 = arith.mulf %56, %49 : vector<24x1xf32>
    %58 = arith.subf %54, %57 : vector<24x1xf32>
    %cst_26 = arith.constant 0.00392156886 : f32
    %59 = vector.broadcast %cst_26 : f32 to vector<24x1xf32>
    %60 = arith.mulf %58, %59 : vector<24x1xf32>
    %cst_27 = arith.constant 1.000000e+00 : f32
    %61 = vector.broadcast %cst_27 : f32 to vector<24x1xf32>
    %62 = arith.subf %61, %60 : vector<24x1xf32>
    %63 = arith.mulf %0, %62 : vector<24x1xf32>
    %64 = vector.broadcast %63 : vector<24x1xf32> to vector<24x256xf32>
    %65 = arith.mulf %45, %64 : vector<24x256xf32>
    %c0_28 = arith.constant 0 : index
    %c0_29 = arith.constant 0 : index
    %c0_30 = arith.constant 0 : index
    %66 = vector.load %arg4[%c0_28, %c0_29, %c0_30] : memref<1x24x256xf32, #tpu.memory_space<vmem>>, vector<1x24x256xf32>
    %67 = vector.shape_cast %66 : vector<1x24x256xf32> to vector<24x256xf32>
    %68 = vector.shape_cast %65 : vector<24x256xf32> to vector<1x24x256xf32>
    tpu.vector_store %arg4[%c0_28, %c0_29, %c0_30], %68 {strides = array<i32>} : memref<1x24x256xf32, #tpu.memory_space<vmem>>, vector<1x24x256xf32>,
    return
  }
  func.func @transform_0(%arg0: i32) -> (i32, i32, i32) {
    %c0_i32 = arith.constant 0 : i32
    %c0_i32_0 = arith.constant 0 : i32
    %c0_i32_1 = arith.constant 0 : i32
    %c0_i32_2 = arith.constant 0 : i32
    return %c0_i32, %c0_i32_0, %c0_i32_1 : i32, i32, i32
  }
  func.func @transform_1(%arg0: i32) -> (i32, i32) {
    %c0_i32 = arith.constant 0 : i32
    %c0_i32_0 = arith.constant 0 : i32
    %c0_i32_1 = arith.constant 0 : i32
    return %c0_i32, %c0_i32_0 : i32, i32
  }
  func.func @transform_2(%arg0: i32) -> (i32, i32, i32) {
    %c0_i32 = arith.constant 0 : i32
    %c0_i32_0 = arith.constant 0 : i32
    %c0_i32_1 = arith.constant 0 : i32
    return %arg0, %c0_i32, %c0_i32_0 : i32, i32, i32
  }
  func.func @transform_3(%arg0: i32) -> (i32, i32, i32) {
    %c0_i32 = arith.constant 0 : i32
    %c0_i32_0 = arith.constant 0 : i32
    %c0_i32_1 = arith.constant 0 : i32
    return %arg0, %c0_i32, %c0_i32_0 : i32, i32, i32
  }
}

</mosaic_0001>

<llo_original>
// kernel: tile.13
$region0: #{tile.13}
  %s0 = inlined_call_operand.vmem [shape: f32[9,8,3,256], index: 0, kind: input, shape index: {}]
  %s1 = inlined_call_operand.vmem [shape: f32[9,24,256], index: 1, kind: output, shape index: {}]
  $region1: #{tile.13} parent=0
    #allocation0 [shape = 'u8[589824]{0}', space=vmem, size = 0x90000, scoped, tag = 'scoped mem for input reshape']
    %s3 = sshll.u32 1, 4
    %s4 = ssub.s32 %s3, 1
    %s5 = smul.addr 4, 143
    %s6 = scalar_lea.vmem %s0, %s5
    %v7 = vld [vmem:[%s6] sm:%s4]
    %s8 = scalar_lea.vmem [#allocation0], 1144
    %9 = vst [vmem:[%s8] sm:%s4] %v7
    %s10 = smul.addr 4, 142
    %s11 = scalar_lea.vmem %s0, %s10
    %v12 = vld [vmem:[%s11] sm:%s4]
    %s13 = scalar_lea.vmem [#allocation0], 1136
    %14 = vst [vmem:[%s13] sm:%s4] %v12
    %s15 = smul.addr 4, 141
    %s16 = scalar_lea.vmem %s0, %s15
    %v17 = vld [vmem:[%s16] sm:%s4]
    %s18 = scalar_lea.vmem [#allocation0], 1128
    %19 = vst [vmem:[%s18] sm:%s4] %v17
    %s20 = smul.addr 4, 140
    %s21 = scalar_lea.vmem %s0, %s20
    %v22 = vld [vmem:[%s21] sm:%s4]
    %s23 = scalar_lea.vmem [#allocation0], 1120
    %24 = vst [vmem:[%s23] sm:%s4] %v22
    %s25 = smul.addr 4, 139
    %s26 = scalar_lea.vmem %s0, %s25
    %v27 = vld [vmem:[%s26] sm:%s4]
    %s28 = scalar_lea.vmem [#allocation0], 1112
    %29 = vst [vmem:[%s28] sm:%s4] %v27
    %s30 = smul.addr 4, 138
    %s31 = scalar_lea.vmem %s0, %s30
    %v32 = vld [vmem:[%s31] sm:%s4]
    %s33 = scalar_lea.vmem [#allocation0], 1104
    %34 = vst [vmem:[%s33] sm:%s4] %v32
    %s35 = smul.addr 4, 137
    %s36 = scalar_lea.vmem %s0, %s35
    %v37 = vld [vmem:[%s36] sm:%s4]
    %s38 = scalar_lea.vmem [#allocation0], 1096
    %39 = vst [vmem:[%s38] sm:%s4] %v37
    %s40 = smul.addr 4, 136
    %s41 = scalar_lea.vmem %s0, %s40
    %v42 = vld [vmem:[%s41] sm:%s4]
    %s43 = scalar_lea.vmem [#allocation0], 1088
    %44 = vst [vmem:[%s43] sm:%s4] %v42
    %s45 = smul.addr 4, 135
    %s46 = scalar_lea.vmem %s0, %s45
    %v47 = vld [vmem:[%s46] sm:%s4]
    %s48 = scalar_lea.vmem [#allocation0], 1080
    %49 = vst [vmem:[%s48] sm:%s4] %v47
    %s50 = smul.addr 4, 134
    %s51 = scalar_lea.vmem %s0, %s50
    %v52 = vld [vmem:[%s51] sm:%s4]
    %s53 = scalar_lea.vmem [#allocation0], 1072
    %54 = vst [vmem:[%s53] sm:%s4] %v52
    %s55 = smul.addr 4, 133
    %s56 = scalar_lea.vmem %s0, %s55
    %v57 = vld [vmem:[%s56] sm:%s4]
    %s58 = scalar_lea.vmem [#allocation0], 1064
    %59 = vst [vmem:[%s58] sm:%s4] %v57
    %s60 = smul.addr 4, 132
    %s61 = scalar_lea.vmem %s0, %s60
    %v62 = vld [vmem:[%s61] sm:%s4]
    %s63 = scalar_lea.vmem [#allocation0], 1056
    %64 = vst [vmem:[%s63] sm:%s4] %v62
    %s65 = smul.addr 4, 131
    %s66 = scalar_lea.vmem %s0, %s65
    %v67 = vld [vmem:[%s66] sm:%s4]
    %s68 = scalar_lea.vmem [#allocation0], 1048
    %69 = vst [vmem:[%s68] sm:%s4] %v67
    %s70 = smul.addr 4, 130
    %s71 = scalar_lea.vmem %s0, %s70
    %v72 = vld [vmem:[%s71] sm:%s4]
    %s73 = scalar_lea.vmem [#allocation0], 1040
    %74 = vst [vmem:[%s73] sm:%s4] %v72
    %s75 = smul.addr 4, 129
    %s76 = scalar_lea.vmem %s0, %s75
    %v77 = vld [vmem:[%s76] sm:%s4]
    %s78 = scalar_lea.vmem [#allocation0], 1032
    %79 = vst [vmem:[%s78] sm:%s4] %v77
    %s80 = smul.addr 4, 128
    %s81 = scalar_lea.vmem %s0, %s80
    %v82 = vld [vmem:[%s81] sm:%s4]
    %s83 = scalar_lea.vmem [#allocation0], 1024
    %84 = vst [vmem:[%s83] sm:%s4] %v82
    %s85 = smul.addr 4, 127
    %s86 = scalar_lea.vmem %s0, %s85
    %v87 = vld [vmem:[%s86] sm:%s4]
    %s88 = scalar_lea.vmem [#allocation0], 1016
    %89 = vst [vmem:[%s88] sm:%s4] %v87
    %s90 = smul.addr 4, 126
    %s91 = scalar_lea.vmem %s0, %s90
    %v92 = vld [vmem:[%s91] sm:%s4]
    %s93 = scalar_lea.vmem [#allocation0], 1008
    %94 = vst [vmem:[%s93] sm:%s4] %v92
    %s95 = smul.addr 4, 125
    %s96 = scalar_lea.vmem %s0, %s95
    %v97 = vld [vmem:[%s96] sm:%s4]
    %s98 = scalar_lea.vmem [#allocation0], 1000
    %99 = vst [vmem:[%s98] sm:%s4] %v97
    %s100 = smul.addr 4, 124
    %s101 = scalar_lea.vmem %s0, %s100
    %v102 = vld [vmem:[%s101] sm:%s4]
    %s103 = scalar_lea.vmem [#allocation0], 992
    %104 = vst [vmem:[%s103] sm:%s4] %v102
    %s105 = smul.addr 4, 123
    %s106 = scalar_lea.vmem %s0, %s105
    %v107 = vld [vmem:[%s106] sm:%s4]
    %s108 = scalar_lea.vmem [#allocation0], 984
    %109 = vst [vmem:[%s108] sm:%s4] %v107
    %s110 = smul.addr 4, 122
    %s111 = scalar_lea.vmem %s0, %s110
    %v112 = vld [vmem:[%s111] sm:%s4]
    %s113 = scalar_lea.vmem [#allocation0], 976
    %114 = vst [vmem:[%s113] sm:%s4] %v112
    %s115 = smul.addr 4, 121
    %s116 = scalar_lea.vmem %s0, %s115
    %v117 = vld [vmem:[%s116] sm:%s4]
    %s118 = scalar_lea.vmem [#allocation0], 968
    %119 = vst [vmem:[%s118] sm:%s4] %v117
    %s120 = smul.addr 4, 120
    %s121 = scalar_lea.vmem %s0, %s120
    %v122 = vld [vmem:[%s121] sm:%s4]
    %s123 = scalar_lea.vmem [#allocation0], 960
    %124 = vst [vmem:[%s123] sm:%s4] %v122
    %s125 = smul.addr 4, 119
    %s126 = scalar_lea.vmem %s0, %s125
    %v127 = vld [vmem:[%s126] sm:%s4]
    %s128 = scalar_lea.vmem [#allocation0], 952
    %129 = vst [vmem:[%s128] sm:%s4] %v127
    %s130 = smul.addr 4, 118
    %s131 = scalar_lea.vmem %s0, %s130
    %v132 = vld [vmem:[%s131] sm:%s4]
    %s133 = scalar_lea.vmem [#allocation0], 944
    %134 = vst [vmem:[%s133] sm:%s4] %v132
    %s135 = smul.addr 4, 117
    %s136 = scalar_lea.vmem %s0, %s135
    %v137 = vld [vmem:[%s136] sm:%s4]
    %s138 = scalar_lea.vmem [#allocation0], 936
    %139 = vst [vmem:[%s138] sm:%s4] %v137
    %s140 = smul.addr 4, 116
    %s141 = scalar_lea.vmem %s0, %s140
    %v142 = vld [vmem:[%s141] sm:%s4]
    %s143 = scalar_lea.vmem [#allocation0], 928
    %144 = vst [vmem:[%s143] sm:%s4] %v142
    %s145 = smul.addr 4, 115
    %s146 = scalar_lea.vmem %s0, %s145
    %v147 = vld [vmem:[%s146] sm:%s4]
    %s148 = scalar_lea.vmem [#allocation0], 920
    %149 = vst [vmem:[%s148] sm:%s4] %v147
    %s150 = smul.addr 4, 114
    %s151 = scalar_lea.vmem %s0, %s150
    %v152 = vld [vmem:[%s151] sm:%s4]
    %s153 = scalar_lea.vmem [#allocation0], 912
    %154 = vst [vmem:[%s153] sm:%s4] %v152
    %s155 = smul.addr 4, 113
    %s156 = scalar_lea.vmem %s0, %s155
    %v157 = vld [vmem:[%s156] sm:%s4]
    %s158 = scalar_lea.vmem [#allocation0], 904
    %159 = vst [vmem:[%s158] sm:%s4] %v157
    %s160 = smul.addr 4, 112
    %s161 = scalar_lea.vmem %s0, %s160
    %v162 = vld [vmem:[%s161] sm:%s4]
    %s163 = scalar_lea.vmem [#allocation0], 896
    %164 = vst [vmem:[%s163] sm:%s4] %v162
    %s165 = smul.addr 4, 111
    %s166 = scalar_lea.vmem %s0, %s165
    %v167 = vld [vmem:[%s166] sm:%s4]
    %s168 = scalar_lea.vmem [#allocation0], 888
    %169 = vst [vmem:[%s168] sm:%s4] %v167
    %s170 = smul.addr 4, 110
    %s171 = scalar_lea.vmem %s0, %s170
    %v172 = vld [vmem:[%s171] sm:%s4]
    %s173 = scalar_lea.vmem [#allocation0], 880
    %174 = vst [vmem:[%s173] sm:%s4] %v172
    %s175 = smul.addr 4, 109
    %s176 = scalar_lea.vmem %s0, %s175
    %v177 = vld [vmem:[%s176] sm:%s4]
    %s178 = scalar_lea.vmem [#allocation0], 872
    %179 = vst [vmem:[%s178] sm:%s4] %v177
    %s180 = smul.addr 4, 108
    %s181 = scalar_lea.vmem %s0, %s180
    %v182 = vld [vmem:[%s181] sm:%s4]
    %s183 = scalar_lea.vmem [#allocation0], 864
    %184 = vst [vmem:[%s183] sm:%s4] %v182
    %s185 = smul.addr 4, 107
    %s186 = scalar_lea.vmem %s0, %s185
    %v187 = vld [vmem:[%s186] sm:%s4]
    %s188 = scalar_lea.vmem [#allocation0], 856
    %189 = vst [vmem:[%s188] sm:%s4] %v187
    %s190 = smul.addr 4, 106
    %s191 = scalar_lea.vmem %s0, %s190
    %v192 = vld [vmem:[%s191] sm:%s4]
    %s193 = scalar_lea.vmem [#allocation0], 848
    %194 = vst [vmem:[%s193] sm:%s4] %v192
    %s195 = smul.addr 4, 105
    %s196 = scalar_lea.vmem %s0, %s195
    %v197 = vld [vmem:[%s196] sm:%s4]
    %s198 = scalar_lea.vmem [#allocation0], 840
    %199 = vst [vmem:[%s198] sm:%s4] %v197
    %s200 = smul.addr 4, 104
    %s201 = scalar_lea.vmem %s0, %s200
    %v202 = vld [vmem:[%s201] sm:%s4]
    %s203 = scalar_lea.vmem [#allocation0], 832
    %204 = vst [vmem:[%s203] sm:%s4] %v202
    %s205 = smul.addr 4, 103
    %s206 = scalar_lea.vmem %s0, %s205
    %v207 = vld [vmem:[%s206] sm:%s4]
    %s208 = scalar_lea.vmem [#allocation0], 824
    %209 = vst [vmem:[%s208] sm:%s4] %v207
    %s210 = smul.addr 4, 102
    %s211 = scalar_lea.vmem %s0, %s210
    %v212 = vld [vmem:[%s211] sm:%s4]
    %s213 = scalar_lea.vmem [#allocation0], 816
    %214 = vst [vmem:[%s213] sm:%s4] %v212
    %s215 = smul.addr 4, 101
    %s216 = scalar_lea.vmem %s0, %s215
    %v217 = vld [vmem:[%s216] sm:%s4]
    %s218 = scalar_lea.vmem [#allocation0], 808
    %219 = vst [vmem:[%s218] sm:%s4] %v217
    %s220 = smul.addr 4, 100
    %s221 = scalar_lea.vmem %s0, %s220
    %v222 = vld [vmem:[%s221] sm:%s4]
    %s223 = scalar_lea.vmem [#allocation0], 800
    %224 = vst [vmem:[%s223] sm:%s4] %v222
    %s225 = smul.addr 4, 99
    %s226 = scalar_lea.vmem %s0, %s225
    %v227 = vld [vmem:[%s226] sm:%s4]
    %s228 = scalar_lea.vmem [#allocation0], 792
    %229 = vst [vmem:[%s228] sm:%s4] %v227
    %s230 = smul.addr 4, 98
    %s231 = scalar_lea.vmem %s0, %s230
    %v232 = vld [vmem:[%s231] sm:%s4]
    %s233 = scalar_lea.vmem [#allocation0], 784
    %234 = vst [vmem:[%s233] sm:%s4] %v232
    %s235 = smul.addr 4, 97
    %s236 = scalar_lea.vmem %s0, %s235
    %v237 = vld [vmem:[%s236] sm:%s4]
    %s238 = scalar_lea.vmem [#allocation0], 776
    %239 = vst [vmem:[%s238] sm:%s4] %v237
    %s240 = smul.addr 4, 96
    %s241 = scalar_lea.vmem %s0, %s240
    %v242 = vld [vmem:[%s241] sm:%s4]
    %s243 = scalar_lea.vmem [#allocation0], 768
    %244 = vst [vmem:[%s243] sm:%s4] %v242
    %s245 = smul.addr 4, 95
    %s246 = scalar_lea.vmem %s0, %s245
    %v247 = vld [vmem:[%s246] sm:%s4]
    %s248 = scalar_lea.vmem [#allocation0], 760
    %249 = vst [vmem:[%s248] sm:%s4] %v247
    %s250 = smul.addr 4, 94
    %s251 = scalar_lea.vmem %s0, %s250
    %v252 = vld [vmem:[%s251] sm:%s4]
    %s253 = scalar_lea.vmem [#allocation0], 752
    %254 = vst [vmem:[%s253] sm:%s4] %v252
    %s255 = smul.addr 4, 93
    %s256 = scalar_lea.vmem %s0, %s255
    %v257 = vld [vmem:[%s256] sm:%s4]
    %s258 = scalar_lea.vmem [#allocation0], 744
    %259 = vst [vmem:[%s258] sm:%s4] %v257
    %s260 = smul.addr 4, 92
    %s261 = scalar_lea.vmem %s0, %s260
    %v262 = vld [vmem:[%s261] sm:%s4]
    %s263 = scalar_lea.vmem [#allocation0], 736
    %264 = vst [vmem:[%s263] sm:%s4] %v262
    %s265 = smul.addr 4, 91
    %s266 = scalar_lea.vmem %s0, %s265
    %v267 = vld [vmem:[%s266] sm:%s4]
    %s268 = scalar_lea.vmem [#allocation0], 728
    %269 = vst [vmem:[%s268] sm:%s4] %v267
    %s270 = smul.addr 4, 90
    %s271 = scalar_lea.vmem %s0, %s270
    %v272 = vld [vmem:[%s271] sm:%s4]
    %s273 = scalar_lea.vmem [#allocation0], 720
    %274 = vst [vmem:[%s273] sm:%s4] %v272
    %s275 = smul.addr 4, 89
    %s276 = scalar_lea.vmem %s0, %s275
    %v277 = vld [vmem:[%s276] sm:%s4]
    %s278 = scalar_lea.vmem [#allocation0], 712
    %279 = vst [vmem:[%s278] sm:%s4] %v277
    %s280 = smul.addr 4, 88
    %s281 = scalar_lea.vmem %s0, %s280
    %v282 = vld [vmem:[%s281] sm:%s4]
    %s283 = scalar_lea.vmem [#allocation0], 704
    %284 = vst [vmem:[%s283] sm:%s4] %v282
    %s285 = smul.addr 4, 87
    %s286 = scalar_lea.vmem %s0, %s285
    %v287 = vld [vmem:[%s286] sm:%s4]
    %s288 = scalar_lea.vmem [#allocation0], 696
    %289 = vst [vmem:[%s288] sm:%s4] %v287
    %s290 = smul.addr 4, 86
    %s291 = scalar_lea.vmem %s0, %s290
    %v292 = vld [vmem:[%s291] sm:%s4]
    %s293 = scalar_lea.vmem [#allocation0], 688
    %294 = vst [vmem:[%s293] sm:%s4] %v292
    %s295 = smul.addr 4, 85
    %s296 = scalar_lea.vmem %s0, %s295
    %v297 = vld [vmem:[%s296] sm:%s4]
    %s298 = scalar_lea.vmem [#allocation0], 680
    %299 = vst [vmem:[%s298] sm:%s4] %v297
    %s300 = smul.addr 4, 84
    %s301 = scalar_lea.vmem %s0, %s300
    %v302 = vld [vmem:[%s301] sm:%s4]
    %s303 = scalar_lea.vmem [#allocation0], 672
    %304 = vst [vmem:[%s303] sm:%s4] %v302
    %s305 = smul.addr 4, 83
    %s306 = scalar_lea.vmem %s0, %s305
    %v307 = vld [vmem:[%s306] sm:%s4]
    %s308 = scalar_lea.vmem [#allocation0], 664
    %309 = vst [vmem:[%s308] sm:%s4] %v307
    %s310 = smul.addr 4, 82
    %s311 = scalar_lea.vmem %s0, %s310
    %v312 = vld [vmem:[%s311] sm:%s4]
    %s313 = scalar_lea.vmem [#allocation0], 656
    %314 = vst [vmem:[%s313] sm:%s4] %v312
    %s315 = smul.addr 4, 81
    %s316 = scalar_lea.vmem %s0, %s315
    %v317 = vld [vmem:[%s316] sm:%s4]
    %s318 = scalar_lea.vmem [#allocation0], 648
    %319 = vst [vmem:[%s318] sm:%s4] %v317
    %s320 = smul.addr 4, 80
    %s321 = scalar_lea.vmem %s0, %s320
    %v322 = vld [vmem:[%s321] sm:%s4]
    %s323 = scalar_lea.vmem [#allocation0], 640
    %324 = vst [vmem:[%s323] sm:%s4] %v322
    %s325 = smul.addr 4, 79
    %s326 = scalar_lea.vmem %s0, %s325
    %v327 = vld [vmem:[%s326] sm:%s4]
    %s328 = scalar_lea.vmem [#allocation0], 632
    %329 = vst [vmem:[%s328] sm:%s4] %v327
    %s330 = smul.addr 4, 78
    %s331 = scalar_lea.vmem %s0, %s330
    %v332 = vld [vmem:[%s331] sm:%s4]
    %s333 = scalar_lea.vmem [#allocation0], 624
    %334 = vst [vmem:[%s333] sm:%s4] %v332
    %s335 = smul.addr 4, 77
    %s336 = scalar_lea.vmem %s0, %s335
    %v337 = vld [vmem:[%s336] sm:%s4]
    %s338 = scalar_lea.vmem [#allocation0], 616
    %339 = vst [vmem:[%s338] sm:%s4] %v337
    %s340 = smul.addr 4, 76
    %s341 = scalar_lea.vmem %s0, %s340
    %v342 = vld [vmem:[%s341] sm:%s4]
    %s343 = scalar_lea.vmem [#allocation0], 608
    %344 = vst [vmem:[%s343] sm:%s4] %v342
    %s345 = smul.addr 4, 75
    %s346 = scalar_lea.vmem %s0, %s345
    %v347 = vld [vmem:[%s346] sm:%s4]
    %s348 = scalar_lea.vmem [#allocation0], 600
    %349 = vst [vmem:[%s348] sm:%s4] %v347
    %s350 = smul.addr 4, 74
    %s351 = scalar_lea.vmem %s0, %s350
    %v352 = vld [vmem:[%s351] sm:%s4]
    %s353 = scalar_lea.vmem [#allocation0], 592
    %354 = vst [vmem:[%s353] sm:%s4] %v352
    %s355 = smul.addr 4, 73
    %s356 = scalar_lea.vmem %s0, %s355
    %v357 = vld [vmem:[%s356] sm:%s4]
    %s358 = scalar_lea.vmem [#allocation0], 584
    %359 = vst [vmem:[%s358] sm:%s4] %v357
    %s360 = smul.addr 4, 72
    %s361 = scalar_lea.vmem %s0, %s360
    %v362 = vld [vmem:[%s361] sm:%s4]
    %s363 = scalar_lea.vmem [#allocation0], 576
    %364 = vst [vmem:[%s363] sm:%s4] %v362
    %s365 = smul.addr 4, 71
    %s366 = scalar_lea.vmem %s0, %s365
    %v367 = vld [vmem:[%s366] sm:%s4]
    %s368 = scalar_lea.vmem [#allocation0], 568
    %369 = vst [vmem:[%s368] sm:%s4] %v367
    %s370 = smul.addr 4, 70
    %s371 = scalar_lea.vmem %s0, %s370
    %v372 = vld [vmem:[%s371] sm:%s4]
    %s373 = scalar_lea.vmem [#allocation0], 560
    %374 = vst [vmem:[%s373] sm:%s4] %v372
    %s375 = smul.addr 4, 69
    %s376 = scalar_lea.vmem %s0, %s375
    %v377 = vld [vmem:[%s376] sm:%s4]
    %s378 = scalar_lea.vmem [#allocation0], 552
    %379 = vst [vmem:[%s378] sm:%s4] %v377
    %s380 = smul.addr 4, 68
    %s381 = scalar_lea.vmem %s0, %s380
    %v382 = vld [vmem:[%s381] sm:%s4]
    %s383 = scalar_lea.vmem [#allocation0], 544
    %384 = vst [vmem:[%s383] sm:%s4] %v382
    %s385 = smul.addr 4, 67
    %s386 = scalar_lea.vmem %s0, %s385
    %v387 = vld [vmem:[%s386] sm:%s4]
    %s388 = scalar_lea.vmem [#allocation0], 536
    %389 = vst [vmem:[%s388] sm:%s4] %v387
    %s390 = smul.addr 4, 66
    %s391 = scalar_lea.vmem %s0, %s390
    %v392 = vld [vmem:[%s391] sm:%s4]
    %s393 = scalar_lea.vmem [#allocation0], 528
    %394 = vst [vmem:[%s393] sm:%s4] %v392
    %s395 = smul.addr 4, 65
    %s396 = scalar_lea.vmem %s0, %s395
    %v397 = vld [vmem:[%s396] sm:%s4]
    %s398 = scalar_lea.vmem [#allocation0], 520
    %399 = vst [vmem:[%s398] sm:%s4] %v397
    %s400 = smul.addr 4, 64
    %s401 = scalar_lea.vmem %s0, %s400
    %v402 = vld [vmem:[%s401] sm:%s4]
    %s403 = scalar_lea.vmem [#allocation0], 512
    %404 = vst [vmem:[%s403] sm:%s4] %v402
    %s405 = smul.addr 4, 63
    %s406 = scalar_lea.vmem %s0, %s405
    %v407 = vld [vmem:[%s406] sm:%s4]
    %s408 = scalar_lea.vmem [#allocation0], 504
    %409 = vst [vmem:[%s408] sm:%s4] %v407
    %s410 = smul.addr 4, 62
    %s411 = scalar_lea.vmem %s0, %s410
    %v412 = vld [vmem:[%s411] sm:%s4]
    %s413 = scalar_lea.vmem [#allocation0], 496
    %414 = vst [vmem:[%s413] sm:%s4] %v412
    %s415 = smul.addr 4, 61
    %s416 = scalar_lea.vmem %s0, %s415
    %v417 = vld [vmem:[%s416] sm:%s4]
    %s418 = scalar_lea.vmem [#allocation0], 488
    %419 = vst [vmem:[%s418] sm:%s4] %v417
    %s420 = smul.addr 4, 60
    %s421 = scalar_lea.vmem %s0, %s420
    %v422 = vld [vmem:[%s421] sm:%s4]
    %s423 = scalar_lea.vmem [#allocation0], 480
    %424 = vst [vmem:[%s423] sm:%s4] %v422
    %s425 = smul.addr 4, 59
    %s426 = scalar_lea.vmem %s0, %s425
    %v427 = vld [vmem:[%s426] sm:%s4]
    %s428 = scalar_lea.vmem [#allocation0], 472
    %429 = vst [vmem:[%s428] sm:%s4] %v427
    %s430 = smul.addr 4, 58
    %s431 = scalar_lea.vmem %s0, %s430
    %v432 = vld [vmem:[%s431] sm:%s4]
    %s433 = scalar_lea.vmem [#allocation0], 464
    %434 = vst [vmem:[%s433] sm:%s4] %v432
    %s435 = smul.addr 4, 57
    %s436 = scalar_lea.vmem %s0, %s435
    %v437 = vld [vmem:[%s436] sm:%s4]
    %s438 = scalar_lea.vmem [#allocation0], 456
    %439 = vst [vmem:[%s438] sm:%s4] %v437
    %s440 = smul.addr 4, 56
    %s441 = scalar_lea.vmem %s0, %s440
    %v442 = vld [vmem:[%s441] sm:%s4]
    %s443 = scalar_lea.vmem [#allocation0], 448
    %444 = vst [vmem:[%s443] sm:%s4] %v442
    %s445 = smul.addr 4, 55
    %s446 = scalar_lea.vmem %s0, %s445
    %v447 = vld [vmem:[%s446] sm:%s4]
    %s448 = scalar_lea.vmem [#allocation0], 440
    %449 = vst [vmem:[%s448] sm:%s4] %v447
    %s450 = smul.addr 4, 54
    %s451 = scalar_lea.vmem %s0, %s450
    %v452 = vld [vmem:[%s451] sm:%s4]
    %s453 = scalar_lea.vmem [#allocation0], 432
    %454 = vst [vmem:[%s453] sm:%s4] %v452
    %s455 = smul.addr 4, 53
    %s456 = scalar_lea.vmem %s0, %s455
    %v457 = vld [vmem:[%s456] sm:%s4]
    %s458 = scalar_lea.vmem [#allocation0], 424
    %459 = vst [vmem:[%s458] sm:%s4] %v457
    %s460 = smul.addr 4, 52
    %s461 = scalar_lea.vmem %s0, %s460
    %v462 = vld [vmem:[%s461] sm:%s4]
    %s463 = scalar_lea.vmem [#allocation0], 416
    %464 = vst [vmem:[%s463] sm:%s4] %v462
    %s465 = smul.addr 4, 51
    %s466 = scalar_lea.vmem %s0, %s465
    %v467 = vld [vmem:[%s466] sm:%s4]
    %s468 = scalar_lea.vmem [#allocation0], 408
    %469 = vst [vmem:[%s468] sm:%s4] %v467
    %s470 = smul.addr 4, 50
    %s471 = scalar_lea.vmem %s0, %s470
    %v472 = vld [vmem:[%s471] sm:%s4]
    %s473 = scalar_lea.vmem [#allocation0], 400
    %474 = vst [vmem:[%s473] sm:%s4] %v472
    %s475 = smul.addr 4, 49
    %s476 = scalar_lea.vmem %s0, %s475
    %v477 = vld [vmem:[%s476] sm:%s4]
    %s478 = scalar_lea.vmem [#allocation0], 392
    %479 = vst [vmem:[%s478] sm:%s4] %v477
    %s480 = smul.addr 4, 48
    %s481 = scalar_lea.vmem %s0, %s480
    %v482 = vld [vmem:[%s481] sm:%s4]
    %s483 = scalar_lea.vmem [#allocation0], 384
    %484 = vst [vmem:[%s483] sm:%s4] %v482
    %s485 = smul.addr 4, 47
    %s486 = scalar_lea.vmem %s0, %s485
    %v487 = vld [vmem:[%s486] sm:%s4]
    %s488 = scalar_lea.vmem [#allocation0], 376
    %489 = vst [vmem:[%s488] sm:%s4] %v487
    %s490 = smul.addr 4, 46
    %s491 = scalar_lea.vmem %s0, %s490
    %v492 = vld [vmem:[%s491] sm:%s4]
    %s493 = scalar_lea.vmem [#allocation0], 368
    %494 = vst [vmem:[%s493] sm:%s4] %v492
    %s495 = smul.addr 4, 45
    %s496 = scalar_lea.vmem %s0, %s495
    %v497 = vld [vmem:[%s496] sm:%s4]
    %s498 = scalar_lea.vmem [#allocation0], 360
    %499 = vst [vmem:[%s498] sm:%s4] %v497
    %s500 = smul.addr 4, 44
    %s501 = scalar_lea.vmem %s0, %s500
    %v502 = vld [vmem:[%s501] sm:%s4]
    %s503 = scalar_lea.vmem [#allocation0], 352
    %504 = vst [vmem:[%s503] sm:%s4] %v502
    %s505 = smul.addr 4, 43
    %s506 = scalar_lea.vmem %s0, %s505
    %v507 = vld [vmem:[%s506] sm:%s4]
    %s508 = scalar_lea.vmem [#allocation0], 344
    %509 = vst [vmem:[%s508] sm:%s4] %v507
    %s510 = smul.addr 4, 42
    %s511 = scalar_lea.vmem %s0, %s510
    %v512 = vld [vmem:[%s511] sm:%s4]
    %s513 = scalar_lea.vmem [#allocation0], 336
    %514 = vst [vmem:[%s513] sm:%s4] %v512
    %s515 = smul.addr 4, 41
    %s516 = scalar_lea.vmem %s0, %s515
    %v517 = vld [vmem:[%s516] sm:%s4]
    %s518 = scalar_lea.vmem [#allocation0], 328
    %519 = vst [vmem:[%s518] sm:%s4] %v517
    %s520 = smul.addr 4, 40
    %s521 = scalar_lea.vmem %s0, %s520
    %v522 = vld [vmem:[%s521] sm:%s4]
    %s523 = scalar_lea.vmem [#allocation0], 320
    %524 = vst [vmem:[%s523] sm:%s4] %v522
    %s525 = smul.addr 4, 39
    %s526 = scalar_lea.vmem %s0, %s525
    %v527 = vld [vmem:[%s526] sm:%s4]
    %s528 = scalar_lea.vmem [#allocation0], 312
    %529 = vst [vmem:[%s528] sm:%s4] %v527
    %s530 = smul.addr 4, 38
    %s531 = scalar_lea.vmem %s0, %s530
    %v532 = vld [vmem:[%s531] sm:%s4]
    %s533 = scalar_lea.vmem [#allocation0], 304
    %534 = vst [vmem:[%s533] sm:%s4] %v532
    %s535 = smul.addr 4, 37
    %s536 = scalar_lea.vmem %s0, %s535
    %v537 = vld [vmem:[%s536] sm:%s4]
    %s538 = scalar_lea.vmem [#allocation0], 296
    %539 = vst [vmem:[%s538] sm:%s4] %v537
    %s540 = smul.addr 4, 36
    %s541 = scalar_lea.vmem %s0, %s540
    %v542 = vld [vmem:[%s541] sm:%s4]
    %s543 = scalar_lea.vmem [#allocation0], 288
    %544 = vst [vmem:[%s543] sm:%s4] %v542
    %s545 = smul.addr 4, 35
    %s546 = scalar_lea.vmem %s0, %s545
    %v547 = vld [vmem:[%s546] sm:%s4]
    %s548 = scalar_lea.vmem [#allocation0], 280
    %549 = vst [vmem:[%s548] sm:%s4] %v547
    %s550 = smul.addr 4, 34
    %s551 = scalar_lea.vmem %s0, %s550
    %v552 = vld [vmem:[%s551] sm:%s4]
    %s553 = scalar_lea.vmem [#allocation0], 272
    %554 = vst [vmem:[%s553] sm:%s4] %v552
    %s555 = smul.addr 4, 33
    %s556 = scalar_lea.vmem %s0, %s555
    %v557 = vld [vmem:[%s556] sm:%s4]
    %s558 = scalar_lea.vmem [#allocation0], 264
    %559 = vst [vmem:[%s558] sm:%s4] %v557
    %s560 = smul.addr 4, 32
    %s561 = scalar_lea.vmem %s0, %s560
    %v562 = vld [vmem:[%s561] sm:%s4]
    %s563 = scalar_lea.vmem [#allocation0], 256
    %564 = vst [vmem:[%s563] sm:%s4] %v562
    %s565 = smul.addr 4, 31
    %s566 = scalar_lea.vmem %s0, %s565
    %v567 = vld [vmem:[%s566] sm:%s4]
    %s568 = scalar_lea.vmem [#allocation0], 248
    %569 = vst [vmem:[%s568] sm:%s4] %v567
    %s570 = smul.addr 4, 30
    %s571 = scalar_lea.vmem %s0, %s570
    %v572 = vld [vmem:[%s571] sm:%s4]
    %s573 = scalar_lea.vmem [#allocation0], 240
    %574 = vst [vmem:[%s573] sm:%s4] %v572
    %s575 = smul.addr 4, 29
    %s576 = scalar_lea.vmem %s0, %s575
    %v577 = vld [vmem:[%s576] sm:%s4]
    %s578 = scalar_lea.vmem [#allocation0], 232
    %579 = vst [vmem:[%s578] sm:%s4] %v577
    %s580 = smul.addr 4, 28
    %s581 = scalar_lea.vmem %s0, %s580
    %v582 = vld [vmem:[%s581] sm:%s4]
    %s583 = scalar_lea.vmem [#allocation0], 224
    %584 = vst [vmem:[%s583] sm:%s4] %v582
    %s585 = smul.addr 4, 27
    %s586 = scalar_lea.vmem %s0, %s585
    %v587 = vld [vmem:[%s586] sm:%s4]
    %s588 = scalar_lea.vmem [#allocation0], 216
    %589 = vst [vmem:[%s588] sm:%s4] %v587
    %s590 = smul.addr 4, 26
    %s591 = scalar_lea.vmem %s0, %s590
    %v592 = vld [vmem:[%s591] sm:%s4]
    %s593 = scalar_lea.vmem [#allocation0], 208
    %594 = vst [vmem:[%s593] sm:%s4] %v592
    %s595 = smul.addr 4, 25
    %s596 = scalar_lea.vmem %s0, %s595
    %v597 = vld [vmem:[%s596] sm:%s4]
    %s598 = scalar_lea.vmem [#allocation0], 200
    %599 = vst [vmem:[%s598] sm:%s4] %v597
    %s600 = smul.addr 4, 24
    %s601 = scalar_lea.vmem %s0, %s600
    %v602 = vld [vmem:[%s601] sm:%s4]
    %s603 = scalar_lea.vmem [#allocation0], 192
    %604 = vst [vmem:[%s603] sm:%s4] %v602
    %s605 = smul.addr 4, 23
    %s606 = scalar_lea.vmem %s0, %s605
    %v607 = vld [vmem:[%s606] sm:%s4]
    %s608 = scalar_lea.vmem [#allocation0], 184
    %609 = vst [vmem:[%s608] sm:%s4] %v607
    %s610 = smul.addr 4, 22
    %s611 = scalar_lea.vmem %s0, %s610
    %v612 = vld [vmem:[%s611] sm:%s4]
    %s613 = scalar_lea.vmem [#allocation0], 176
    %614 = vst [vmem:[%s613] sm:%s4] %v612
    %s615 = smul.addr 4, 21
    %s616 = scalar_lea.vmem %s0, %s615
    %v617 = vld [vmem:[%s616] sm:%s4]
    %s618 = scalar_lea.vmem [#allocation0], 168
    %619 = vst [vmem:[%s618] sm:%s4] %v617
    %s620 = smul.addr 4, 20
    %s621 = scalar_lea.vmem %s0, %s620
    %v622 = vld [vmem:[%s621] sm:%s4]
    %s623 = scalar_lea.vmem [#allocation0], 160
    %624 = vst [vmem:[%s623] sm:%s4] %v622
    %s625 = smul.addr 4, 19
    %s626 = scalar_lea.vmem %s0, %s625
    %v627 = vld [vmem:[%s626] sm:%s4]
    %s628 = scalar_lea.vmem [#allocation0], 152
    %629 = vst [vmem:[%s628] sm:%s4] %v627
    %s630 = smul.addr 4, 18
    %s631 = scalar_lea.vmem %s0, %s630
    %v632 = vld [vmem:[%s631] sm:%s4]
    %s633 = scalar_lea.vmem [#allocation0], 144
    %634 = vst [vmem:[%s633] sm:%s4] %v632
    %s635 = smul.addr 4, 17
    %s636 = scalar_lea.vmem %s0, %s635
    %v637 = vld [vmem:[%s636] sm:%s4]
    %s638 = scalar_lea.vmem [#allocation0], 136
    %639 = vst [vmem:[%s638] sm:%s4] %v637
    %s640 = smul.addr 4, 16
    %s641 = scalar_lea.vmem %s0, %s640
    %v642 = vld [vmem:[%s641] sm:%s4]
    %s643 = scalar_lea.vmem [#allocation0], 128
    %644 = vst [vmem:[%s643] sm:%s4] %v642
    %s645 = smul.addr 4, 15
    %s646 = scalar_lea.vmem %s0, %s645
    %v647 = vld [vmem:[%s646] sm:%s4]
    %s648 = scalar_lea.vmem [#allocation0], 120
    %649 = vst [vmem:[%s648] sm:%s4] %v647
    %s650 = smul.addr 4, 14
    %s651 = scalar_lea.vmem %s0, %s650
    %v652 = vld [vmem:[%s651] sm:%s4]
    %s653 = scalar_lea.vmem [#allocation0], 112
    %654 = vst [vmem:[%s653] sm:%s4] %v652
    %s655 = smul.addr 4, 13
    %s656 = scalar_lea.vmem %s0, %s655
    %v657 = vld [vmem:[%s656] sm:%s4]
    %s658 = scalar_lea.vmem [#allocation0], 104
    %659 = vst [vmem:[%s658] sm:%s4] %v657
    %s660 = smul.addr 4, 12
    %s661 = scalar_lea.vmem %s0, %s660
    %v662 = vld [vmem:[%s661] sm:%s4]
    %s663 = scalar_lea.vmem [#allocation0], 96
    %664 = vst [vmem:[%s663] sm:%s4] %v662
    %s665 = smul.addr 4, 11
    %s666 = scalar_lea.vmem %s0, %s665
    %v667 = vld [vmem:[%s666] sm:%s4]
    %s668 = scalar_lea.vmem [#allocation0], 88
    %669 = vst [vmem:[%s668] sm:%s4] %v667
    %s670 = smul.addr 4, 10
    %s671 = scalar_lea.vmem %s0, %s670
    %v672 = vld [vmem:[%s671] sm:%s4]
    %s673 = scalar_lea.vmem [#allocation0], 80
    %674 = vst [vmem:[%s673] sm:%s4] %v672
    %s675 = smul.addr 4, 9
    %s676 = scalar_lea.vmem %s0, %s675
    %v677 = vld [vmem:[%s676] sm:%s4]
    %s678 = scalar_lea.vmem [#allocation0], 72
    %679 = vst [vmem:[%s678] sm:%s4] %v677
    %s680 = smul.addr 4, 8
    %s681 = scalar_lea.vmem %s0, %s680
    %v682 = vld [vmem:[%s681] sm:%s4]
    %s683 = scalar_lea.vmem [#allocation0], 64
    %684 = vst [vmem:[%s683] sm:%s4] %v682
    %s685 = smul.addr 4, 7
    %s686 = scalar_lea.vmem %s0, %s685
    %v687 = vld [vmem:[%s686] sm:%s4]
    %s688 = scalar_lea.vmem [#allocation0], 56
    %689 = vst [vmem:[%s688] sm:%s4] %v687
    %s690 = smul.addr 4, 6
    %s691 = scalar_lea.vmem %s0, %s690
    %v692 = vld [vmem:[%s691] sm:%s4]
    %s693 = scalar_lea.vmem [#allocation0], 48
    %694 = vst [vmem:[%s693] sm:%s4] %v692
    %s695 = smul.addr 4, 5
    %s696 = scalar_lea.vmem %s0, %s695
    %v697 = vld [vmem:[%s696] sm:%s4]
    %s698 = scalar_lea.vmem [#allocation0], 40
    %699 = vst [vmem:[%s698] sm:%s4] %v697
    %s700 = smul.addr 4, 4
    %s701 = scalar_lea.vmem %s0, %s700
    %v702 = vld [vmem:[%s701] sm:%s4]
    %s703 = scalar_lea.vmem [#allocation0], 32
    %704 = vst [vmem:[%s703] sm:%s4] %v702
    %s705 = smul.addr 4, 3
    %s706 = scalar_lea.vmem %s0, %s705
    %v707 = vld [vmem:[%s706] sm:%s4]
    %s708 = scalar_lea.vmem [#allocation0], 24
    %709 = vst [vmem:[%s708] sm:%s4] %v707
    %s710 = smul.addr 4, 2
    %s711 = scalar_lea.vmem %s0, %s710
    %v712 = vld [vmem:[%s711] sm:%s4]
    %s713 = scalar_lea.vmem [#allocation0], 16
    %714 = vst [vmem:[%s713] sm:%s4] %v712
    %s715 = scalar_lea.vmem %s0, 4
    %v716 = vld [vmem:[%s715] sm:%s4]
    %s717 = scalar_lea.vmem [#allocation0], 8
    %718 = vst [vmem:[%s717] sm:%s4] %v716
    %v719 = vld [vmem:[%s0] sm:%s4]
    %720 = vst [vmem:[#allocation0] sm:%s4] %v719
    %v721 = vld [vmem:[#allocation0] sm:$0x7]
    %722 = vst [vmem:[%s1] sm:$0x7] %v721
    %s723 = scalar_lea.vmem [#allocation0], 8
    %v724 = vld [vmem:[%s723] sm:$0x7]
    %s725 = scalar_lea.vmem %s1, 8
    %726 = vst [vmem:[%s725] sm:$0x7] %v724
    %s727 = scalar_lea.vmem [#allocation0], 16
    %v728 = vld [vmem:[%s727] sm:$0x7]
    %s729 = scalar_lea.vmem %s1, 3
    %730 = vst [vmem:[%s729] sm:$0x7] %v728
    %s731 = scalar_lea.vmem [#allocation0], 24
    %v732 = vld [vmem:[%s731] sm:$0x7]
    %s733 = scalar_lea.vmem %s1, 11
    %734 = vst [vmem:[%s733] sm:$0x7] %v732
    %s735 = scalar_lea.vmem [#allocation0], 32
    %v736 = vld [vmem:[%s735] sm:$0x7]
    %s737 = scalar_lea.vmem %s1, 6
    %738 = vst [vmem:[%s737] sm:$0x3] %v736
    %s739 = scalar_lea.vmem %s1, 14
    %740 = vst [vmem:[%s739] sm:$0x4] %v736
    %s741 = scalar_lea.vmem [#allocation0], 40
    %v742 = vld [vmem:[%s741] sm:$0x7]
    %s743 = scalar_lea.vmem %s1, 14
    %744 = vst [vmem:[%s743] sm:$0x3] %v742
    %s745 = scalar_lea.vmem %s1, 22
    %746 = vst [vmem:[%s745] sm:$0x4] %v742
    %s747 = scalar_lea.vmem [#allocation0], 48
    %v748 = vld [vmem:[%s747] sm:$0x7]
    %s749 = scalar_lea.vmem %s1, 17
    %750 = vst [vmem:[%s749] sm:$0x7] %v748
    %s751 = scalar_lea.vmem [#allocation0], 56
    %v752 = vld [vmem:[%s751] sm:$0x7]
    %s753 = scalar_lea.vmem %s1, 25
    %754 = vst [vmem:[%s753] sm:$0x7] %v752
    %s755 = scalar_lea.vmem [#allocation0], 64
    %v756 = vld [vmem:[%s755] sm:$0x7]
    %s757 = scalar_lea.vmem %s1, 20
    %758 = vst [vmem:[%s757] sm:$0x7] %v756
    %s759 = scalar_lea.vmem [#allocation0], 72
    %v760 = vld [vmem:[%s759] sm:$0x7]
    %s761 = scalar_lea.vmem %s1, 28
    %762 = vst [vmem:[%s761] sm:$0x7] %v760
    %s763 = scalar_lea.vmem [#allocation0], 80
    %v764 = vld [vmem:[%s763] sm:$0x7]
    %s765 = scalar_lea.vmem %s1, 23
    %766 = vst [vmem:[%s765] ss:$9 sm:$0x3] %v764
    %s767 = scalar_lea.vmem %s1, 31
    %768 = vst [vmem:[%s767] sm:$0x4] %v764
    %s769 = scalar_lea.vmem [#allocation0], 88
    %v770 = vld [vmem:[%s769] sm:$0x7]
    %s771 = scalar_lea.vmem %s1, 31
    %772 = vst [vmem:[%s771] ss:$9 sm:$0x3] %v770
    %s773 = scalar_lea.vmem %s1, 39
    %774 = vst [vmem:[%s773] sm:$0x4] %v770
    %s775 = scalar_lea.vmem [#allocation0], 96
    %v776 = vld [vmem:[%s775] sm:$0x7]
    %s777 = scalar_lea.vmem %s1, 34
    %778 = vst [vmem:[%s777] sm:$0x7] %v776
    %s779 = scalar_lea.vmem [#allocation0], 104
    %v780 = vld [vmem:[%s779] sm:$0x7]
    %s781 = scalar_lea.vmem %s1, 42
    %782 = vst [vmem:[%s781] sm:$0x7] %v780
    %s783 = scalar_lea.vmem [#allocation0], 112
    %v784 = vld [vmem:[%s783] sm:$0x7]
    %s785 = scalar_lea.vmem %s1, 37
    %786 = vst [vmem:[%s785] sm:$0x7] %v784
    %s787 = scalar_lea.vmem [#allocation0], 120
    %v788 = vld [vmem:[%s787] sm:$0x7]
    %s789 = scalar_lea.vmem %s1, 45
    %790 = vst [vmem:[%s789] sm:$0x7] %v788
    %s791 = scalar_lea.vmem [#allocation0], 128
    %v792 = vld [vmem:[%s791] sm:$0x7]
    %s793 = scalar_lea.vmem %s1, 48
    %794 = vst [vmem:[%s793] sm:$0x7] %v792
    %s795 = scalar_lea.vmem [#allocation0], 136
    %v796 = vld [vmem:[%s795] sm:$0x7]
    %s797 = scalar_lea.vmem %s1, 56
    %798 = vst [vmem:[%s797] sm:$0x7] %v796
    %s799 = scalar_lea.vmem [#allocation0], 144
    %v800 = vld [vmem:[%s799] sm:$0x7]
    %s801 = scalar_lea.vmem %s1, 51
    %802 = vst [vmem:[%s801] sm:$0x7] %v800
    %s803 = scalar_lea.vmem [#allocation0], 152
    %v804 = vld [vmem:[%s803] sm:$0x7]
    %s805 = scalar_lea.vmem %s1, 59
    %806 = vst [vmem:[%s805] sm:$0x7] %v804
    %s807 = scalar_lea.vmem [#allocation0], 160
    %v808 = vld [vmem:[%s807] sm:$0x7]
    %s809 = scalar_lea.vmem %s1, 54
    %810 = vst [vmem:[%s809] sm:$0x3] %v808
    %s811 = scalar_lea.vmem %s1, 62
    %812 = vst [vmem:[%s811] sm:$0x4] %v808
    %s813 = scalar_lea.vmem [#allocation0], 168
    %v814 = vld [vmem:[%s813] sm:$0x7]
    %s815 = scalar_lea.vmem %s1, 62
    %816 = vst [vmem:[%s815] sm:$0x3] %v814
    %s817 = scalar_lea.vmem %s1, 70
    %818 = vst [vmem:[%s817] sm:$0x4] %v814
    %s819 = scalar_lea.vmem [#allocation0], 176
    %v820 = vld [vmem:[%s819] sm:$0x7]
    %s821 = scalar_lea.vmem %s1, 65
    %822 = vst [vmem:[%s821] sm:$0x7] %v820
    %s823 = scalar_lea.vmem [#allocation0], 184
    %v824 = vld [vmem:[%s823] sm:$0x7]
    %s825 = scalar_lea.vmem %s1, 73
    %826 = vst [vmem:[%s825] sm:$0x7] %v824
    %s827 = scalar_lea.vmem [#allocation0], 192
    %v828 = vld [vmem:[%s827] sm:$0x7]
    %s829 = scalar_lea.vmem %s1, 68
    %830 = vst [vmem:[%s829] sm:$0x7] %v828
    %s831 = scalar_lea.vmem [#allocation0], 200
    %v832 = vld [vmem:[%s831] sm:$0x7]
    %s833 = scalar_lea.vmem %s1, 76
    %834 = vst [vmem:[%s833] sm:$0x7] %v832
    %s835 = scalar_lea.vmem [#allocation0], 208
    %v836 = vld [vmem:[%s835] sm:$0x7]
    %s837 = scalar_lea.vmem %s1, 71
    %838 = vst [vmem:[%s837] ss:$9 sm:$0x3] %v836
    %s839 = scalar_lea.vmem %s1, 79
    %840 = vst [vmem:[%s839] sm:$0x4] %v836
    %s841 = scalar_lea.vmem [#allocation0], 216
    %v842 = vld [vmem:[%s841] sm:$0x7]
    %s843 = scalar_lea.vmem %s1, 79
    %844 = vst [vmem:[%s843] ss:$9 sm:$0x3] %v842
    %s845 = scalar_lea.vmem %s1, 87
    %846 = vst [vmem:[%s845] sm:$0x4] %v842
    %s847 = scalar_lea.vmem [#allocation0], 224
    %v848 = vld [vmem:[%s847] sm:$0x7]
    %s849 = scalar_lea.vmem %s1, 82
    %850 = vst [vmem:[%s849] sm:$0x7] %v848
    %s851 = scalar_lea.vmem [#allocation0], 232
    %v852 = vld [vmem:[%s851] sm:$0x7]
    %s853 = scalar_lea.vmem %s1, 90
    %854 = vst [vmem:[%s853] sm:$0x7] %v852
    %s855 = scalar_lea.vmem [#allocation0], 240
    %v856 = vld [vmem:[%s855] sm:$0x7]
    %s857 = scalar_lea.vmem %s1, 85
    %858 = vst [vmem:[%s857] sm:$0x7] %v856
    %s859 = scalar_lea.vmem [#allocation0], 248
    %v860 = vld [vmem:[%s859] sm:$0x7]
    %s861 = scalar_lea.vmem %s1, 93
    %862 = vst [vmem:[%s861] sm:$0x7] %v860
    %s863 = scalar_lea.vmem [#allocation0], 256
    %v864 = vld [vmem:[%s863] sm:$0x7]
    %s865 = scalar_lea.vmem %s1, 96
    %866 = vst [vmem:[%s865] sm:$0x7] %v864
    %s867 = scalar_lea.vmem [#allocation0], 264
    %v868 = vld [vmem:[%s867] sm:$0x7]
    %s869 = scalar_lea.vmem %s1, 104
    %870 = vst [vmem:[%s869] sm:$0x7] %v868
    %s871 = scalar_lea.vmem [#allocation0], 272
    %v872 = vld [vmem:[%s871] sm:$0x7]
    %s873 = scalar_lea.vmem %s1, 99
    %874 = vst [vmem:[%s873] sm:$0x7] %v872
    %s875 = scalar_lea.vmem [#allocation0], 280
    %v876 = vld [vmem:[%s875] sm:$0x7]
    %s877 = scalar_lea.vmem %s1, 107
    %878 = vst [vmem:[%s877] sm:$0x7] %v876
    %s879 = scalar_lea.vmem [#allocation0], 288
    %v880 = vld [vmem:[%s879] sm:$0x7]
    %s881 = scalar_lea.vmem %s1, 102
    %882 = vst [vmem:[%s881] sm:$0x3] %v880
    %s883 = scalar_lea.vmem %s1, 110
    %884 = vst [vmem:[%s883] sm:$0x4] %v880
    %s885 = scalar_lea.vmem [#allocation0], 296
    %v886 = vld [vmem:[%s885] sm:$0x7]
    %s887 = scalar_lea.vmem %s1, 110
    %888 = vst [vmem:[%s887] sm:$0x3] %v886
    %s889 = scalar_lea.vmem %s1, 118
    %890 = vst [vmem:[%s889] sm:$0x4] %v886
    %s891 = scalar_lea.vmem [#allocation0], 304
    %v892 = vld [vmem:[%s891] sm:$0x7]
    %s893 = scalar_lea.vmem %s1, 113
    %894 = vst [vmem:[%s893] sm:$0x7] %v892
    %s895 = scalar_lea.vmem [#allocation0], 312
    %v896 = vld [vmem:[%s895] sm:$0x7]
    %s897 = scalar_lea.vmem %s1, 121
    %898 = vst [vmem:[%s897] sm:$0x7] %v896
    %s899 = scalar_lea.vmem [#allocation0], 320
    %v900 = vld [vmem:[%s899] sm:$0x7]
    %s901 = scalar_lea.vmem %s1, 116
    %902 = vst [vmem:[%s901] sm:$0x7] %v900
    %s903 = scalar_lea.vmem [#allocation0], 328
    %v904 = vld [vmem:[%s903] sm:$0x7]
    %s905 = scalar_lea.vmem %s1, 124
    %906 = vst [vmem:[%s905] sm:$0x7] %v904
    %s907 = scalar_lea.vmem [#allocation0], 336
    %v908 = vld [vmem:[%s907] sm:$0x7]
    %s909 = scalar_lea.vmem %s1, 119
    %910 = vst [vmem:[%s909] ss:$9 sm:$0x3] %v908
    %s911 = scalar_lea.vmem %s1, 127
    %912 = vst [vmem:[%s911] sm:$0x4] %v908
    %s913 = scalar_lea.vmem [#allocation0], 344
    %v914 = vld [vmem:[%s913] sm:$0x7]
    %s915 = scalar_lea.vmem %s1, 127
    %916 = vst [vmem:[%s915] ss:$9 sm:$0x3] %v914
    %s917 = scalar_lea.vmem %s1, 135
    %918 = vst [vmem:[%s917] sm:$0x4] %v914
    %s919 = scalar_lea.vmem [#allocation0], 352
    %v920 = vld [vmem:[%s919] sm:$0x7]
    %s921 = scalar_lea.vmem %s1, 130
    %922 = vst [vmem:[%s921] sm:$0x7] %v920
    %s923 = scalar_lea.vmem [#allocation0], 360
    %v924 = vld [vmem:[%s923] sm:$0x7]
    %s925 = scalar_lea.vmem %s1, 138
    %926 = vst [vmem:[%s925] sm:$0x7] %v924
    %s927 = scalar_lea.vmem [#allocation0], 368
    %v928 = vld [vmem:[%s927] sm:$0x7]
    %s929 = scalar_lea.vmem %s1, 133
    %930 = vst [vmem:[%s929] sm:$0x7] %v928
    %s931 = scalar_lea.vmem [#allocation0], 376
    %v932 = vld [vmem:[%s931] sm:$0x7]
    %s933 = scalar_lea.vmem %s1, 141
    %934 = vst [vmem:[%s933] sm:$0x7] %v932
    %s935 = scalar_lea.vmem [#allocation0], 384
    %v936 = vld [vmem:[%s935] sm:$0x7]
    %s937 = scalar_lea.vmem %s1, 144
    %938 = vst [vmem:[%s937] sm:$0x7] %v936
    %s939 = scalar_lea.vmem [#allocation0], 392
    %v940 = vld [vmem:[%s939] sm:$0x7]
    %s941 = scalar_lea.vmem %s1, 152
    %942 = vst [vmem:[%s941] sm:$0x7] %v940
    %s943 = scalar_lea.vmem [#allocation0], 400
    %v944 = vld [vmem:[%s943] sm:$0x7]
    %s945 = scalar_lea.vmem %s1, 147
    %946 = vst [vmem:[%s945] sm:$0x7] %v944
    %s947 = scalar_lea.vmem [#allocation0], 408
    %v948 = vld [vmem:[%s947] sm:$0x7]
    %s949 = scalar_lea.vmem %s1, 155
    %950 = vst [vmem:[%s949] sm:$0x7] %v948
    %s951 = scalar_lea.vmem [#allocation0], 416
    %v952 = vld [vmem:[%s951] sm:$0x7]
    %s953 = scalar_lea.vmem %s1, 150
    %954 = vst [vmem:[%s953] sm:$0x3] %v952
    %s955 = scalar_lea.vmem %s1, 158
    %956 = vst [vmem:[%s955] sm:$0x4] %v952
    %s957 = scalar_lea.vmem [#allocation0], 424
    %v958 = vld [vmem:[%s957] sm:$0x7]
    %s959 = scalar_lea.vmem %s1, 158
    %960 = vst [vmem:[%s959] sm:$0x3] %v958
    %s961 = scalar_lea.vmem %s1, 166
    %962 = vst [vmem:[%s961] sm:$0x4] %v958
    %s963 = scalar_lea.vmem [#allocation0], 432
    %v964 = vld [vmem:[%s963] sm:$0x7]
    %s965 = scalar_lea.vmem %s1, 161
    %966 = vst [vmem:[%s965] sm:$0x7] %v964
    %s967 = scalar_lea.vmem [#allocation0], 440
    %v968 = vld [vmem:[%s967] sm:$0x7]
    %s969 = scalar_lea.vmem %s1, 169
    %970 = vst [vmem:[%s969] sm:$0x7] %v968
    %s971 = scalar_lea.vmem [#allocation0], 448
    %v972 = vld [vmem:[%s971] sm:$0x7]
    %s973 = scalar_lea.vmem %s1, 164
    %974 = vst [vmem:[%s973] sm:$0x7] %v972
    %s975 = scalar_lea.vmem [#allocation0], 456
    %v976 = vld [vmem:[%s975] sm:$0x7]
    %s977 = scalar_lea.vmem %s1, 172
    %978 = vst [vmem:[%s977] sm:$0x7] %v976
    %s979 = scalar_lea.vmem [#allocation0], 464
    %v980 = vld [vmem:[%s979] sm:$0x7]
    %s981 = scalar_lea.vmem %s1, 167
    %982 = vst [vmem:[%s981] ss:$9 sm:$0x3] %v980
    %s983 = scalar_lea.vmem %s1, 175
    %984 = vst [vmem:[%s983] sm:$0x4] %v980
    %s985 = scalar_lea.vmem [#allocation0], 472
    %v986 = vld [vmem:[%s985] sm:$0x7]
    %s987 = scalar_lea.vmem %s1, 175
    %988 = vst [vmem:[%s987] ss:$9 sm:$0x3] %v986
    %s989 = scalar_lea.vmem %s1, 183
    %990 = vst [vmem:[%s989] sm:$0x4] %v986
    %s991 = scalar_lea.vmem [#allocation0], 480
    %v992 = vld [vmem:[%s991] sm:$0x7]
    %s993 = scalar_lea.vmem %s1, 178
    %994 = vst [vmem:[%s993] sm:$0x7] %v992
    %s995 = scalar_lea.vmem [#allocation0], 488
    %v996 = vld [vmem:[%s995] sm:$0x7]
    %s997 = scalar_lea.vmem %s1, 186
    %998 = vst [vmem:[%s997] sm:$0x7] %v996
    %s999 = scalar_lea.vmem [#allocation0], 496
    %v1000 = vld [vmem:[%s999] sm:$0x7]
    %s1001 = scalar_lea.vmem %s1, 181
    %1002 = vst [vmem:[%s1001] sm:$0x7] %v1000
    %s1003 = scalar_lea.vmem [#allocation0], 504
    %v1004 = vld [vmem:[%s1003] sm:$0x7]
    %s1005 = scalar_lea.vmem %s1, 189
    %1006 = vst [vmem:[%s1005] sm:$0x7] %v1004
    %s1007 = scalar_lea.vmem [#allocation0], 512
    %v1008 = vld [vmem:[%s1007] sm:$0x7]
    %s1009 = scalar_lea.vmem %s1, 192
    %1010 = vst [vmem:[%s1009] sm:$0x7] %v1008
    %s1011 = scalar_lea.vmem [#allocation0], 520
    %v1012 = vld [vmem:[%s1011] sm:$0x7]
    %s1013 = scalar_lea.vmem %s1, 200
    %1014 = vst [vmem:[%s1013] sm:$0x7] %v1012
    %s1015 = scalar_lea.vmem [#allocation0], 528
    %v1016 = vld [vmem:[%s1015] sm:$0x7]
    %s1017 = scalar_lea.vmem %s1, 195
    %1018 = vst [vmem:[%s1017] sm:$0x7] %v1016
    %s1019 = scalar_lea.vmem [#allocation0], 536
    %v1020 = vld [vmem:[%s1019] sm:$0x7]
    %s1021 = scalar_lea.vmem %s1, 203
    %1022 = vst [vmem:[%s1021] sm:$0x7] %v1020
    %s1023 = scalar_lea.vmem [#allocation0], 544
    %v1024 = vld [vmem:[%s1023] sm:$0x7]
    %s1025 = scalar_lea.vmem %s1, 198
    %1026 = vst [vmem:[%s1025] sm:$0x3] %v1024
    %s1027 = scalar_lea.vmem %s1, 206
    %1028 = vst [vmem:[%s1027] sm:$0x4] %v1024
    %s1029 = scalar_lea.vmem [#allocation0], 552
    %v1030 = vld [vmem:[%s1029] sm:$0x7]
    %s1031 = scalar_lea.vmem %s1, 206
    %1032 = vst [vmem:[%s1031] sm:$0x3] %v1030
    %s1033 = scalar_lea.vmem %s1, 214
    %1034 = vst [vmem:[%s1033] sm:$0x4] %v1030
    %s1035 = scalar_lea.vmem [#allocation0], 560
    %v1036 = vld [vmem:[%s1035] sm:$0x7]
    %s1037 = scalar_lea.vmem %s1, 209
    %1038 = vst [vmem:[%s1037] sm:$0x7] %v1036
    %s1039 = scalar_lea.vmem [#allocation0], 568
    %v1040 = vld [vmem:[%s1039] sm:$0x7]
    %s1041 = scalar_lea.vmem %s1, 217
    %1042 = vst [vmem:[%s1041] sm:$0x7] %v1040
    %s1043 = scalar_lea.vmem [#allocation0], 576
    %v1044 = vld [vmem:[%s1043] sm:$0x7]
    %s1045 = scalar_lea.vmem %s1, 212
    %1046 = vst [vmem:[%s1045] sm:$0x7] %v1044
    %s1047 = scalar_lea.vmem [#allocation0], 584
    %v1048 = vld [vmem:[%s1047] sm:$0x7]
    %s1049 = scalar_lea.vmem %s1, 220
    %1050 = vst [vmem:[%s1049] sm:$0x7] %v1048
    %s1051 = scalar_lea.vmem [#allocation0], 592
    %v1052 = vld [vmem:[%s1051] sm:$0x7]
    %s1053 = scalar_lea.vmem %s1, 215
    %1054 = vst [vmem:[%s1053] ss:$9 sm:$0x3] %v1052
    %s1055 = scalar_lea.vmem %s1, 223
    %1056 = vst [vmem:[%s1055] sm:$0x4] %v1052
    %s1057 = scalar_lea.vmem [#allocation0], 600
    %v1058 = vld [vmem:[%s1057] sm:$0x7]
    %s1059 = scalar_lea.vmem %s1, 223
    %1060 = vst [vmem:[%s1059] ss:$9 sm:$0x3] %v1058
    %s1061 = scalar_lea.vmem %s1, 231
    %1062 = vst [vmem:[%s1061] sm:$0x4] %v1058
    %s1063 = scalar_lea.vmem [#allocation0], 608
    %v1064 = vld [vmem:[%s1063] sm:$0x7]
    %s1065 = scalar_lea.vmem %s1, 226
    %1066 = vst [vmem:[%s1065] sm:$0x7] %v1064
    %s1067 = scalar_lea.vmem [#allocation0], 616
    %v1068 = vld [vmem:[%s1067] sm:$0x7]
    %s1069 = scalar_lea.vmem %s1, 234
    %1070 = vst [vmem:[%s1069] sm:$0x7] %v1068
    %s1071 = scalar_lea.vmem [#allocation0], 624
    %v1072 = vld [vmem:[%s1071] sm:$0x7]
    %s1073 = scalar_lea.vmem %s1, 229
    %1074 = vst [vmem:[%s1073] sm:$0x7] %v1072
    %s1075 = scalar_lea.vmem [#allocation0], 632
    %v1076 = vld [vmem:[%s1075] sm:$0x7]
    %s1077 = scalar_lea.vmem %s1, 237
    %1078 = vst [vmem:[%s1077] sm:$0x7] %v1076
    %s1079 = scalar_lea.vmem [#allocation0], 640
    %v1080 = vld [vmem:[%s1079] sm:$0x7]
    %s1081 = scalar_lea.vmem %s1, 240
    %1082 = vst [vmem:[%s1081] sm:$0x7] %v1080
    %s1083 = scalar_lea.vmem [#allocation0], 648
    %v1084 = vld [vmem:[%s1083] sm:$0x7]
    %s1085 = scalar_lea.vmem %s1, 248
    %1086 = vst [vmem:[%s1085] sm:$0x7] %v1084
    %s1087 = scalar_lea.vmem [#allocation0], 656
    %v1088 = vld [vmem:[%s1087] sm:$0x7]
    %s1089 = scalar_lea.vmem %s1, 243
    %1090 = vst [vmem:[%s1089] sm:$0x7] %v1088
    %s1091 = scalar_lea.vmem [#allocation0], 664
    %v1092 = vld [vmem:[%s1091] sm:$0x7]
    %s1093 = scalar_lea.vmem %s1, 251
    %1094 = vst [vmem:[%s1093] sm:$0x7] %v1092
    %s1095 = scalar_lea.vmem [#allocation0], 672
    %v1096 = vld [vmem:[%s1095] sm:$0x7]
    %s1097 = scalar_lea.vmem %s1, 246
    %1098 = vst [vmem:[%s1097] sm:$0x3] %v1096
    %s1099 = scalar_lea.vmem %s1, 254
    %1100 = vst [vmem:[%s1099] sm:$0x4] %v1096
    %s1101 = scalar_lea.vmem [#allocation0], 680
    %v1102 = vld [vmem:[%s1101] sm:$0x7]
    %s1103 = scalar_lea.vmem %s1, 254
    %1104 = vst [vmem:[%s1103] sm:$0x3] %v1102
    %s1105 = scalar_lea.vmem %s1, 262
    %1106 = vst [vmem:[%s1105] sm:$0x4] %v1102
    %s1107 = scalar_lea.vmem [#allocation0], 688
    %v1108 = vld [vmem:[%s1107] sm:$0x7]
    %s1109 = scalar_lea.vmem %s1, 257
    %1110 = vst [vmem:[%s1109] sm:$0x7] %v1108
    %s1111 = scalar_lea.vmem [#allocation0], 696
    %v1112 = vld [vmem:[%s1111] sm:$0x7]
    %s1113 = scalar_lea.vmem %s1, 265
    %1114 = vst [vmem:[%s1113] sm:$0x7] %v1112
    %s1115 = scalar_lea.vmem [#allocation0], 704
    %v1116 = vld [vmem:[%s1115] sm:$0x7]
    %s1117 = scalar_lea.vmem %s1, 260
    %1118 = vst [vmem:[%s1117] sm:$0x7] %v1116
    %s1119 = scalar_lea.vmem [#allocation0], 712
    %v1120 = vld [vmem:[%s1119] sm:$0x7]
    %s1121 = scalar_lea.vmem %s1, 268
    %1122 = vst [vmem:[%s1121] sm:$0x7] %v1120
    %s1123 = scalar_lea.vmem [#allocation0], 720
    %v1124 = vld [vmem:[%s1123] sm:$0x7]
    %s1125 = scalar_lea.vmem %s1, 263
    %1126 = vst [vmem:[%s1125] ss:$9 sm:$0x3] %v1124
    %s1127 = scalar_lea.vmem %s1, 271
    %1128 = vst [vmem:[%s1127] sm:$0x4] %v1124
    %s1129 = scalar_lea.vmem [#allocation0], 728
    %v1130 = vld [vmem:[%s1129] sm:$0x7]
    %s1131 = scalar_lea.vmem %s1, 271
    %1132 = vst [vmem:[%s1131] ss:$9 sm:$0x3] %v1130
    %s1133 = scalar_lea.vmem %s1, 279
    %1134 = vst [vmem:[%s1133] sm:$0x4] %v1130
    %s1135 = scalar_lea.vmem [#allocation0], 736
    %v1136 = vld [vmem:[%s1135] sm:$0x7]
    %s1137 = scalar_lea.vmem %s1, 274
    %1138 = vst [vmem:[%s1137] sm:$0x7] %v1136
    %s1139 = scalar_lea.vmem [#allocation0], 744
    %v1140 = vld [vmem:[%s1139] sm:$0x7]
    %s1141 = scalar_lea.vmem %s1, 282
    %1142 = vst [vmem:[%s1141] sm:$0x7] %v1140
    %s1143 = scalar_lea.vmem [#allocation0], 752
    %v1144 = vld [vmem:[%s1143] sm:$0x7]
    %s1145 = scalar_lea.vmem %s1, 277
    %1146 = vst [vmem:[%s1145] sm:$0x7] %v1144
    %s1147 = scalar_lea.vmem [#allocation0], 760
    %v1148 = vld [vmem:[%s1147] sm:$0x7]
    %s1149 = scalar_lea.vmem %s1, 285
    %1150 = vst [vmem:[%s1149] sm:$0x7] %v1148
    %s1151 = scalar_lea.vmem [#allocation0], 768
    %v1152 = vld [vmem:[%s1151] sm:$0x7]
    %s1153 = scalar_lea.vmem %s1, 288
    %1154 = vst [vmem:[%s1153] sm:$0x7] %v1152
    %s1155 = scalar_lea.vmem [#allocation0], 776
    %v1156 = vld [vmem:[%s1155] sm:$0x7]
    %s1157 = scalar_lea.vmem %s1, 296
    %1158 = vst [vmem:[%s1157] sm:$0x7] %v1156
    %s1159 = scalar_lea.vmem [#allocation0], 784
    %v1160 = vld [vmem:[%s1159] sm:$0x7]
    %s1161 = scalar_lea.vmem %s1, 291
    %1162 = vst [vmem:[%s1161] sm:$0x7] %v1160
    %s1163 = scalar_lea.vmem [#allocation0], 792
    %v1164 = vld [vmem:[%s1163] sm:$0x7]
    %s1165 = scalar_lea.vmem %s1, 299
    %1166 = vst [vmem:[%s1165] sm:$0x7] %v1164
    %s1167 = scalar_lea.vmem [#allocation0], 800
    %v1168 = vld [vmem:[%s1167] sm:$0x7]
    %s1169 = scalar_lea.vmem %s1, 294
    %1170 = vst [vmem:[%s1169] sm:$0x3] %v1168
    %s1171 = scalar_lea.vmem %s1, 302
    %1172 = vst [vmem:[%s1171] sm:$0x4] %v1168
    %s1173 = scalar_lea.vmem [#allocation0], 808
    %v1174 = vld [vmem:[%s1173] sm:$0x7]
    %s1175 = scalar_lea.vmem %s1, 302
    %1176 = vst [vmem:[%s1175] sm:$0x3] %v1174
    %s1177 = scalar_lea.vmem %s1, 310
    %1178 = vst [vmem:[%s1177] sm:$0x4] %v1174
    %s1179 = scalar_lea.vmem [#allocation0], 816
    %v1180 = vld [vmem:[%s1179] sm:$0x7]
    %s1181 = scalar_lea.vmem %s1, 305
    %1182 = vst [vmem:[%s1181] sm:$0x7] %v1180
    %s1183 = scalar_lea.vmem [#allocation0], 824
    %v1184 = vld [vmem:[%s1183] sm:$0x7]
    %s1185 = scalar_lea.vmem %s1, 313
    %1186 = vst [vmem:[%s1185] sm:$0x7] %v1184
    %s1187 = scalar_lea.vmem [#allocation0], 832
    %v1188 = vld [vmem:[%s1187] sm:$0x7]
    %s1189 = scalar_lea.vmem %s1, 308
    %1190 = vst [vmem:[%s1189] sm:$0x7] %v1188
    %s1191 = scalar_lea.vmem [#allocation0], 840
    %v1192 = vld [vmem:[%s1191] sm:$0x7]
    %s1193 = scalar_lea.vmem %s1, 316
    %1194 = vst [vmem:[%s1193] sm:$0x7] %v1192
    %s1195 = scalar_lea.vmem [#allocation0], 848
    %v1196 = vld [vmem:[%s1195] sm:$0x7]
    %s1197 = scalar_lea.vmem %s1, 311
    %1198 = vst [vmem:[%s1197] ss:$9 sm:$0x3] %v1196
    %s1199 = scalar_lea.vmem %s1, 319
    %1200 = vst [vmem:[%s1199] sm:$0x4] %v1196
    %s1201 = scalar_lea.vmem [#allocation0], 856
    %v1202 = vld [vmem:[%s1201] sm:$0x7]
    %s1203 = scalar_lea.vmem %s1, 319
    %1204 = vst [vmem:[%s1203] ss:$9 sm:$0x3] %v1202
    %s1205 = scalar_lea.vmem %s1, 327
    %1206 = vst [vmem:[%s1205] sm:$0x4] %v1202
    %s1207 = scalar_lea.vmem [#allocation0], 864
    %v1208 = vld [vmem:[%s1207] sm:$0x7]
    %s1209 = scalar_lea.vmem %s1, 322
    %1210 = vst [vmem:[%s1209] sm:$0x7] %v1208
    %s1211 = scalar_lea.vmem [#allocation0], 872
    %v1212 = vld [vmem:[%s1211] sm:$0x7]
    %s1213 = scalar_lea.vmem %s1, 330
    %1214 = vst [vmem:[%s1213] sm:$0x7] %v1212
    %s1215 = scalar_lea.vmem [#allocation0], 880
    %v1216 = vld [vmem:[%s1215] sm:$0x7]
    %s1217 = scalar_lea.vmem %s1, 325
    %1218 = vst [vmem:[%s1217] sm:$0x7] %v1216
    %s1219 = scalar_lea.vmem [#allocation0], 888
    %v1220 = vld [vmem:[%s1219] sm:$0x7]
    %s1221 = scalar_lea.vmem %s1, 333
    %1222 = vst [vmem:[%s1221] sm:$0x7] %v1220
    %s1223 = scalar_lea.vmem [#allocation0], 896
    %v1224 = vld [vmem:[%s1223] sm:$0x7]
    %s1225 = scalar_lea.vmem %s1, 336
    %1226 = vst [vmem:[%s1225] sm:$0x7] %v1224
    %s1227 = scalar_lea.vmem [#allocation0], 904
    %v1228 = vld [vmem:[%s1227] sm:$0x7]
    %s1229 = scalar_lea.vmem %s1, 344
    %1230 = vst [vmem:[%s1229] sm:$0x7] %v1228
    %s1231 = scalar_lea.vmem [#allocation0], 912
    %v1232 = vld [vmem:[%s1231] sm:$0x7]
    %s1233 = scalar_lea.vmem %s1, 339
    %1234 = vst [vmem:[%s1233] sm:$0x7] %v1232
    %s1235 = scalar_lea.vmem [#allocation0], 920
    %v1236 = vld [vmem:[%s1235] sm:$0x7]
    %s1237 = scalar_lea.vmem %s1, 347
    %1238 = vst [vmem:[%s1237] sm:$0x7] %v1236
    %s1239 = scalar_lea.vmem [#allocation0], 928
    %v1240 = vld [vmem:[%s1239] sm:$0x7]
    %s1241 = scalar_lea.vmem %s1, 342
    %1242 = vst [vmem:[%s1241] sm:$0x3] %v1240
    %s1243 = scalar_lea.vmem %s1, 350
    %1244 = vst [vmem:[%s1243] sm:$0x4] %v1240
    %s1245 = scalar_lea.vmem [#allocation0], 936
    %v1246 = vld [vmem:[%s1245] sm:$0x7]
    %s1247 = scalar_lea.vmem %s1, 350
    %1248 = vst [vmem:[%s1247] sm:$0x3] %v1246
    %s1249 = scalar_lea.vmem %s1, 358
    %1250 = vst [vmem:[%s1249] sm:$0x4] %v1246
    %s1251 = scalar_lea.vmem [#allocation0], 944
    %v1252 = vld [vmem:[%s1251] sm:$0x7]
    %s1253 = scalar_lea.vmem %s1, 353
    %1254 = vst [vmem:[%s1253] sm:$0x7] %v1252
    %s1255 = scalar_lea.vmem [#allocation0], 952
    %v1256 = vld [vmem:[%s1255] sm:$0x7]
    %s1257 = scalar_lea.vmem %s1, 361
    %1258 = vst [vmem:[%s1257] sm:$0x7] %v1256
    %s1259 = scalar_lea.vmem [#allocation0], 960
    %v1260 = vld [vmem:[%s1259] sm:$0x7]
    %s1261 = scalar_lea.vmem %s1, 356
    %1262 = vst [vmem:[%s1261] sm:$0x7] %v1260
    %s1263 = scalar_lea.vmem [#allocation0], 968
    %v1264 = vld [vmem:[%s1263] sm:$0x7]
    %s1265 = scalar_lea.vmem %s1, 364
    %1266 = vst [vmem:[%s1265] sm:$0x7] %v1264
    %s1267 = scalar_lea.vmem [#allocation0], 976
    %v1268 = vld [vmem:[%s1267] sm:$0x7]
    %s1269 = scalar_lea.vmem %s1, 359
    %1270 = vst [vmem:[%s1269] ss:$9 sm:$0x3] %v1268
    %s1271 = scalar_lea.vmem %s1, 367
    %1272 = vst [vmem:[%s1271] sm:$0x4] %v1268
    %s1273 = scalar_lea.vmem [#allocation0], 984
    %v1274 = vld [vmem:[%s1273] sm:$0x7]
    %s1275 = scalar_lea.vmem %s1, 367
    %1276 = vst [vmem:[%s1275] ss:$9 sm:$0x3] %v1274
    %s1277 = scalar_lea.vmem %s1, 375
    %1278 = vst [vmem:[%s1277] sm:$0x4] %v1274
    %s1279 = scalar_lea.vmem [#allocation0], 992
    %v1280 = vld [vmem:[%s1279] sm:$0x7]
    %s1281 = scalar_lea.vmem %s1, 370
    %1282 = vst [vmem:[%s1281] sm:$0x7] %v1280
    %s1283 = scalar_lea.vmem [#allocation0], 1000
    %v1284 = vld [vmem:[%s1283] sm:$0x7]
    %s1285 = scalar_lea.vmem %s1, 378
    %1286 = vst [vmem:[%s1285] sm:$0x7] %v1284
    %s1287 = scalar_lea.vmem [#allocation0], 1008
    %v1288 = vld [vmem:[%s1287] sm:$0x7]
    %s1289 = scalar_lea.vmem %s1, 373
    %1290 = vst [vmem:[%s1289] sm:$0x7] %v1288
    %s1291 = scalar_lea.vmem [#allocation0], 1016
    %v1292 = vld [vmem:[%s1291] sm:$0x7]
    %s1293 = scalar_lea.vmem %s1, 381
    %1294 = vst [vmem:[%s1293] sm:$0x7] %v1292
    %s1295 = scalar_lea.vmem [#allocation0], 1024
    %v1296 = vld [vmem:[%s1295] sm:$0x7]
    %s1297 = scalar_lea.vmem %s1, 384
    %1298 = vst [vmem:[%s1297] sm:$0x7] %v1296
    %s1299 = scalar_lea.vmem [#allocation0], 1032
    %v1300 = vld [vmem:[%s1299] sm:$0x7]
    %s1301 = scalar_lea.vmem %s1, 392
    %1302 = vst [vmem:[%s1301] sm:$0x7] %v1300
    %s1303 = scalar_lea.vmem [#allocation0], 1040
    %v1304 = vld [vmem:[%s1303] sm:$0x7]
    %s1305 = scalar_lea.vmem %s1, 387
    %1306 = vst [vmem:[%s1305] sm:$0x7] %v1304
    %s1307 = scalar_lea.vmem [#allocation0], 1048
    %v1308 = vld [vmem:[%s1307] sm:$0x7]
    %s1309 = scalar_lea.vmem %s1, 395
    %1310 = vst [vmem:[%s1309] sm:$0x7] %v1308
    %s1311 = scalar_lea.vmem [#allocation0], 1056
    %v1312 = vld [vmem:[%s1311] sm:$0x7]
    %s1313 = scalar_lea.vmem %s1, 390
    %1314 = vst [vmem:[%s1313] sm:$0x3] %v1312
    %s1315 = scalar_lea.vmem %s1, 398
    %1316 = vst [vmem:[%s1315] sm:$0x4] %v1312
    %s1317 = scalar_lea.vmem [#allocation0], 1064
    %v1318 = vld [vmem:[%s1317] sm:$0x7]
    %s1319 = scalar_lea.vmem %s1, 398
    %1320 = vst [vmem:[%s1319] sm:$0x3] %v1318
    %s1321 = scalar_lea.vmem %s1, 406
    %1322 = vst [vmem:[%s1321] sm:$0x4] %v1318
    %s1323 = scalar_lea.vmem [#allocation0], 1072
    %v1324 = vld [vmem:[%s1323] sm:$0x7]
    %s1325 = scalar_lea.vmem %s1, 401
    %1326 = vst [vmem:[%s1325] sm:$0x7] %v1324
    %s1327 = scalar_lea.vmem [#allocation0], 1080
    %v1328 = vld [vmem:[%s1327] sm:$0x7]
    %s1329 = scalar_lea.vmem %s1, 409
    %1330 = vst [vmem:[%s1329] sm:$0x7] %v1328
    %s1331 = scalar_lea.vmem [#allocation0], 1088
    %v1332 = vld [vmem:[%s1331] sm:$0x7]
    %s1333 = scalar_lea.vmem %s1, 404
    %1334 = vst [vmem:[%s1333] sm:$0x7] %v1332
    %s1335 = scalar_lea.vmem [#allocation0], 1096
    %v1336 = vld [vmem:[%s1335] sm:$0x7]
    %s1337 = scalar_lea.vmem %s1, 412
    %1338 = vst [vmem:[%s1337] sm:$0x7] %v1336
    %s1339 = scalar_lea.vmem [#allocation0], 1104
    %v1340 = vld [vmem:[%s1339] sm:$0x7]
    %s1341 = scalar_lea.vmem %s1, 407
    %1342 = vst [vmem:[%s1341] ss:$9 sm:$0x3] %v1340
    %s1343 = scalar_lea.vmem %s1, 415
    %1344 = vst [vmem:[%s1343] sm:$0x4] %v1340
    %s1345 = scalar_lea.vmem [#allocation0], 1112
    %v1346 = vld [vmem:[%s1345] sm:$0x7]
    %s1347 = scalar_lea.vmem %s1, 415
    %1348 = vst [vmem:[%s1347] ss:$9 sm:$0x3] %v1346
    %s1349 = scalar_lea.vmem %s1, 423
    %1350 = vst [vmem:[%s1349] sm:$0x4] %v1346
    %s1351 = scalar_lea.vmem [#allocation0], 1120
    %v1352 = vld [vmem:[%s1351] sm:$0x7]
    %s1353 = scalar_lea.vmem %s1, 418
    %1354 = vst [vmem:[%s1353] sm:$0x7] %v1352
    %s1355 = scalar_lea.vmem [#allocation0], 1128
    %v1356 = vld [vmem:[%s1355] sm:$0x7]
    %s1357 = scalar_lea.vmem %s1, 426
    %1358 = vst [vmem:[%s1357] sm:$0x7] %v1356
    %s1359 = scalar_lea.vmem [#allocation0], 1136
    %v1360 = vld [vmem:[%s1359] sm:$0x7]
    %s1361 = scalar_lea.vmem %s1, 421
    %1362 = vst [vmem:[%s1361] sm:$0x7] %v1360
    %s1363 = scalar_lea.vmem [#allocation0], 1144
    %v1364 = vld [vmem:[%s1363] sm:$0x7]
    %s1365 = scalar_lea.vmem %s1, 429
    %1366 = vst [vmem:[%s1365] sm:$0x7] %v1364

// kernel: lite_gabor2_forward.1
$region0: #{lite_gabor2_forward.1}
  #allocation0 [shape = 'u32[]', space=smem, size = 0x4, offset = 0x4, fixed_abs, tag = 'smem constant byte address 0x4 - core index']
  #allocation1 [shape = 'u32[144,128]{1,0:T(1,128)}', space=vmem, size = 0x12000, scoped, tag = 'internal scratch']
  %s0 = inlined_call_operand.vmem [shape: f32[9,24,256], index: 0, kind: input, shape index: {}]
  %s1 = inlined_call_operand.vmem [shape: f32[24,1], index: 1, kind: input, shape index: {}]
  %s2 = inlined_call_operand.vmem [shape: f32[1,24,256], index: 2, kind: input, shape index: {}]
  %s3 = inlined_call_operand.vmem [shape: f32[1,24,256], index: 3, kind: output, shape index: {}]
  %s4 = sld [smem:[#allocation0]]
  $region22: #{lite_gabor2_forward.1} parent=0
    _
  %s6 = ssub.s32 1, %s4
  %s7 = scalar_select 0, %s6, %s4
  // Predicated region
  $region2: #{lite_gabor2_forward.1} parent=0 // pred_check
    _
  $region3: #{lite_gabor2_forward.1} parent=0 // pred_check_branch
    %9 = sbr.rel (0) target = $region5
  $region4: #{lite_gabor2_forward.1} parent=0 // pred_region
    _
  $region5: #{lite_gabor2_forward.1} parent=0 // pred_fallthru
    _
  // Predicated region
  $region6: #{lite_gabor2_forward.1} parent=0 // pred_check
    _
  $region7: #{lite_gabor2_forward.1} parent=0 // pred_check_branch
    %11 = sbr.rel (0) target = $region9
  $region8: #{lite_gabor2_forward.1} parent=0 // pred_region
    _
  $region9: #{lite_gabor2_forward.1} parent=0 // pred_fallthru
    _
  // Predicated region
  $region10: #{lite_gabor2_forward.1} parent=0 // pred_check
    _
  $region11: #{lite_gabor2_forward.1} parent=0 // pred_check_branch
    %13 = sbr.rel (0) target = $region13
  $region12: #{lite_gabor2_forward.1} parent=0 // pred_region
    _
  $region13: #{lite_gabor2_forward.1} parent=0 // pred_fallthru
    _
  %v14 = vld [vmem:[%s1] sm:$0xff]
  %v15 = vld [vmem:[%s1 + $0x8] sm:$0xff]
  %v16 = vld [vmem:[%s1 + $0x10] sm:$0xff]
  %v17 = vld [vmem:[%s0] sm:$0xff]
  %v18 = vld [vmem:[%s0 + $0x8] sm:$0xff]
  %v19 = vld [vmem:[%s0 + $0x10] sm:$0xff]
  %v20 = vld [vmem:[%s0 + $0x18] sm:$0xff]
  %v21 = vld [vmem:[%s0 + $0x20] sm:$0xff]
  %v22 = vld [vmem:[%s0 + $0x28] sm:$0xff]
  %s23 = scalar_lea.vmem %s0, 48
  %v24 = vld [vmem:[%s23] sm:$0xff]
  %v25 = vld [vmem:[%s23 + $0x8] sm:$0xff]
  %v26 = vld [vmem:[%s23 + $0x10] sm:$0xff]
  %v27 = vld [vmem:[%s23 + $0x18] sm:$0xff]
  %v28 = vld [vmem:[%s23 + $0x20] sm:$0xff]
  %v29 = vld [vmem:[%s23 + $0x28] sm:$0xff]
  %s30 = scalar_lea.vmem %s0, 96
  %v31 = vld [vmem:[%s30] sm:$0xff]
  %v32 = vld [vmem:[%s30 + $0x8] sm:$0xff]
  %v33 = vld [vmem:[%s30 + $0x10] sm:$0xff]
  %v34 = vld [vmem:[%s30 + $0x18] sm:$0xff]
  %v35 = vld [vmem:[%s30 + $0x20] sm:$0xff]
  %v36 = vld [vmem:[%s30 + $0x28] sm:$0xff]
  %s37 = scalar_lea.vmem %s0, 144
  %v38 = vld [vmem:[%s37] sm:$0xff]
  %v39 = vld [vmem:[%s37 + $0x8] sm:$0xff]
  %v40 = vld [vmem:[%s37 + $0x10] sm:$0xff]
  %v41 = vld [vmem:[%s37 + $0x18] sm:$0xff]
  %v42 = vld [vmem:[%s37 + $0x20] sm:$0xff]
  %v43 = vld [vmem:[%s37 + $0x28] sm:$0xff]
  %s44 = scalar_lea.vmem %s0, 192
  %v45 = vld [vmem:[%s44] sm:$0xff]
  %v46 = vld [vmem:[%s44 + $0x8] sm:$0xff]
  %v47 = vld [vmem:[%s44 + $0x10] sm:$0xff]
  %v48 = vld [vmem:[%s44 + $0x18] sm:$0xff]
  %v49 = vld [vmem:[%s44 + $0x20] sm:$0xff]
  %v50 = vld [vmem:[%s44 + $0x28] sm:$0xff]
  %s51 = scalar_lea.vmem %s0, 240
  %v52 = vld [vmem:[%s51] sm:$0xff]
  %v53 = vld [vmem:[%s51 + $0x8] sm:$0xff]
  %v54 = vld [vmem:[%s51 + $0x10] sm:$0xff]
  %v55 = vld [vmem:[%s51 + $0x18] sm:$0xff]
  %v56 = vld [vmem:[%s51 + $0x20] sm:$0xff]
  %v57 = vld [vmem:[%s51 + $0x28] sm:$0xff]
  %s58 = scalar_lea.vmem %s0, 288
  %v59 = vld [vmem:[%s58] sm:$0xff]
  %v60 = vld [vmem:[%s58 + $0x8] sm:$0xff]
  %v61 = vld [vmem:[%s58 + $0x10] sm:$0xff]
  %v62 = vld [vmem:[%s58 + $0x18] sm:$0xff]
  %v63 = vld [vmem:[%s58 + $0x20] sm:$0xff]
  %v64 = vld [vmem:[%s58 + $0x28] sm:$0xff]
  %s65 = scalar_lea.vmem %s0, 336
  %v66 = vld [vmem:[%s65] sm:$0xff]
  %v67 = vld [vmem:[%s65 + $0x8] sm:$0xff]
  %v68 = vld [vmem:[%s65 + $0x10] sm:$0xff]
  %v69 = vld [vmem:[%s65 + $0x18] sm:$0xff]
  %v70 = vld [vmem:[%s65 + $0x20] sm:$0xff]
  %v71 = vld [vmem:[%s65 + $0x28] sm:$0xff]
  %s72 = scalar_lea.vmem %s0, 384
  %v73 = vld [vmem:[%s72] sm:$0xff]
  %v74 = vld [vmem:[%s72 + $0x8] sm:$0xff]
  %v75 = vld [vmem:[%s72 + $0x10] sm:$0xff]
  %v76 = vld [vmem:[%s72 + $0x18] sm:$0xff]
  %v77 = vld [vmem:[%s72 + $0x20] sm:$0xff]
  %v78 = vld [vmem:[%s72 + $0x28] sm:$0xff]
  %v79 = vld [vmem:[%s2] sm:$0xff]
  %v80 = vld [vmem:[%s2 + $0x8] sm:$0xff]
  %v81 = vld [vmem:[%s2 + $0x10] sm:$0xff]
  %v82 = vld [vmem:[%s2 + $0x18] sm:$0xff]
  %v83 = vld [vmem:[%s2 + $0x20] sm:$0xff]
  %v84 = vld [vmem:[%s2 + $0x28] sm:$0xff]
  %85 = vrot.lane.b32.xlu0 %v79, 17
  %v86 = vpop.permute.xlu0 %85
  %87 = vrot.lane.b32.xlu0 %v81, 17
  %v88 = vpop.permute.xlu0 %87
  %89 = vrot.lane.b32.xlu0 %v83, 17
  %v90 = vpop.permute.xlu0 %89
  %91 = vrot.lane.b32.xlu0 %v80, 17
  %v92 = vpop.permute.xlu0 %91
  %93 = vrot.lane.b32.xlu0 %v82, 17
  %v94 = vpop.permute.xlu0 %93
  %95 = vrot.lane.b32.xlu0 %v84, 17
  %v96 = vpop.permute.xlu0 %95
  %v97 = vlaneseq
  %v98 = vand.u32 %v97, 127
  %vm99 = vcmp.lt.s32.totalorder %v98, 17
  %v100 = vsel %vm99, %v86, %v92
  %v101 = vsel %vm99, %v88, %v94
  %v102 = vsel %vm99, %v90, %v96
  %v103 = vsel %vm99, %v92, %v86
  %v104 = vsel %vm99, %v94, %v88
  %v105 = vsel %vm99, %v96, %v90
  %v106 = vmul.f32 %v103, %v17
  %v107 = vmul.f32 %v100, %v18
  %v108 = vmul.f32 %v104, %v19
  %v109 = vmul.f32 %v101, %v20
  %v110 = vmul.f32 %v105, %v21
  %v111 = vmul.f32 %v102, %v22
  %112 = vrot.lane.b32.xlu0 %v79, 16
  %v113 = vpop.permute.xlu0 %112
  %114 = vrot.lane.b32.xlu0 %v81, 16
  %v115 = vpop.permute.xlu0 %114
  %116 = vrot.lane.b32.xlu0 %v83, 16
  %v117 = vpop.permute.xlu0 %116
  %118 = vrot.lane.b32.xlu0 %v80, 16
  %v119 = vpop.permute.xlu0 %118
  %120 = vrot.lane.b32.xlu0 %v82, 16
  %v121 = vpop.permute.xlu0 %120
  %122 = vrot.lane.b32.xlu0 %v84, 16
  %v123 = vpop.permute.xlu0 %122
  %vm124 = vcmp.lt.s32.totalorder %v98, 16
  %v125 = vsel %vm124, %v113, %v119
  %v126 = vsel %vm124, %v115, %v121
  %v127 = vsel %vm124, %v117, %v123
  %v128 = vsel %vm124, %v119, %v113
  %v129 = vsel %vm124, %v121, %v115
  %v130 = vsel %vm124, %v123, %v117
  %v131 = vmul.f32 %v128, %v24
  %v132 = vmul.f32 %v125, %v25
  %v133 = vmul.f32 %v129, %v26
  %v134 = vmul.f32 %v126, %v27
  %v135 = vmul.f32 %v130, %v28
  %v136 = vmul.f32 %v127, %v29
  %137 = vrot.lane.b32.xlu0 %v79, 15
  %v138 = vpop.permute.xlu0 %137
  %139 = vrot.lane.b32.xlu0 %v81, 15
  %v140 = vpop.permute.xlu0 %139
  %141 = vrot.lane.b32.xlu0 %v83, 15
  %v142 = vpop.permute.xlu0 %141
  %143 = vrot.lane.b32.xlu0 %v80, 15
  %v144 = vpop.permute.xlu0 %143
  %145 = vrot.lane.b32.xlu0 %v82, 15
  %v146 = vpop.permute.xlu0 %145
  %147 = vrot.lane.b32.xlu0 %v84, 15
  %v148 = vpop.permute.xlu0 %147
  %vm149 = vcmp.lt.s32.totalorder %v98, 15
  %v150 = vsel %vm149, %v138, %v144
  %v151 = vsel %vm149, %v140, %v146
  %v152 = vsel %vm149, %v142, %v148
  %v153 = vsel %vm149, %v144, %v138
  %v154 = vsel %vm149, %v146, %v140
  %v155 = vsel %vm149, %v148, %v142
  %v156 = vmul.f32 %v153, %v31
  %v157 = vmul.f32 %v150, %v32
  %v158 = vmul.f32 %v154, %v33
  %v159 = vmul.f32 %v151, %v34
  %v160 = vmul.f32 %v155, %v35
  %v161 = vmul.f32 %v152, %v36
  %162 = vrot.lane.b32.xlu0 %v79, 1
  %v163 = vpop.permute.xlu0 %162
  %164 = vrot.lane.b32.xlu0 %v81, 1
  %v165 = vpop.permute.xlu0 %164
  %166 = vrot.lane.b32.xlu0 %v83, 1
  %v167 = vpop.permute.xlu0 %166
  %168 = vrot.lane.b32.xlu0 %v80, 1
  %v169 = vpop.permute.xlu0 %168
  %170 = vrot.lane.b32.xlu0 %v82, 1
  %v171 = vpop.permute.xlu0 %170
  %172 = vrot.lane.b32.xlu0 %v84, 1
  %v173 = vpop.permute.xlu0 %172
  %vm174 = vcmp.lt.s32.totalorder %v98, 1
  %v175 = vsel %vm174, %v163, %v169
  %v176 = vsel %vm174, %v165, %v171
  %v177 = vsel %vm174, %v167, %v173
  %v178 = vsel %vm174, %v169, %v163
  %v179 = vsel %vm174, %v171, %v165
  %v180 = vsel %vm174, %v173, %v167
  %v181 = vmul.f32 %v178, %v38
  %v182 = vmul.f32 %v175, %v39
  %v183 = vmul.f32 %v179, %v40
  %v184 = vmul.f32 %v176, %v41
  %v185 = vmul.f32 %v180, %v42
  %v186 = vmul.f32 %v177, %v43
  %v187 = vmul.f32 %v79, %v45
  %v188 = vmul.f32 %v80, %v46
  %v189 = vmul.f32 %v81, %v47
  %v190 = vmul.f32 %v82, %v48
  %v191 = vmul.f32 %v83, %v49
  %v192 = vmul.f32 %v84, %v50
  %193 = vrot.lane.b32.xlu0 %v79, 127
  %v194 = vpop.permute.xlu0 %193
  %195 = vrot.lane.b32.xlu0 %v81, 127
  %v196 = vpop.permute.xlu0 %195
  %197 = vrot.lane.b32.xlu0 %v83, 127
  %v198 = vpop.permute.xlu0 %197
  %199 = vrot.lane.b32.xlu0 %v80, 127
  %v200 = vpop.permute.xlu0 %199
  %201 = vrot.lane.b32.xlu0 %v82, 127
  %v202 = vpop.permute.xlu0 %201
  %203 = vrot.lane.b32.xlu0 %v84, 127
  %v204 = vpop.permute.xlu0 %203
  %vm205 = vcmp.lt.s32.totalorder %v98, 127
  %v206 = vsel %vm205, %v194, %v200
  %v207 = vsel %vm205, %v196, %v202
  %v208 = vsel %vm205, %v198, %v204
  %v209 = vsel %vm205, %v200, %v194
  %v210 = vsel %vm205, %v202, %v196
  %v211 = vsel %vm205, %v204, %v198
  %v212 = vmul.f32 %v206, %v52
  %v213 = vmul.f32 %v209, %v53
  %v214 = vmul.f32 %v207, %v54
  %v215 = vmul.f32 %v210, %v55
  %v216 = vmul.f32 %v208, %v56
  %v217 = vmul.f32 %v211, %v57
  %218 = vrot.lane.b32.xlu0 %v79, 113
  %v219 = vpop.permute.xlu0 %218
  %220 = vrot.lane.b32.xlu0 %v81, 113
  %v221 = vpop.permute.xlu0 %220
  %222 = vrot.lane.b32.xlu0 %v83, 113
  %v223 = vpop.permute.xlu0 %222
  %224 = vrot.lane.b32.xlu0 %v80, 113
  %v225 = vpop.permute.xlu0 %224
  %226 = vrot.lane.b32.xlu0 %v82, 113
  %v227 = vpop.permute.xlu0 %226
  %228 = vrot.lane.b32.xlu0 %v84, 113
  %v229 = vpop.permute.xlu0 %228
  %vm230 = vcmp.lt.s32.totalorder %v98, 113
  %v231 = vsel %vm230, %v219, %v225
  %v232 = vsel %vm230, %v221, %v227
  %v233 = vsel %vm230, %v223, %v229
  %v234 = vsel %vm230, %v225, %v219
  %v235 = vsel %vm230, %v227, %v221
  %v236 = vsel %vm230, %v229, %v223
  %v237 = vmul.f32 %v231, %v59
  %v238 = vmul.f32 %v234, %v60
  %v239 = vmul.f32 %v232, %v61
  %v240 = vmul.f32 %v235, %v62
  %v241 = vmul.f32 %v233, %v63
  %v242 = vmul.f32 %v236, %v64
  %243 = vrot.lane.b32.xlu0 %v79, 112
  %v244 = vpop.permute.xlu0 %243
  %245 = vrot.lane.b32.xlu0 %v81, 112
  %v246 = vpop.permute.xlu0 %245
  %247 = vrot.lane.b32.xlu0 %v83, 112
  %v248 = vpop.permute.xlu0 %247
  %249 = vrot.lane.b32.xlu0 %v80, 112
  %v250 = vpop.permute.xlu0 %249
  %251 = vrot.lane.b32.xlu0 %v82, 112
  %v252 = vpop.permute.xlu0 %251
  %253 = vrot.lane.b32.xlu0 %v84, 112
  %v254 = vpop.permute.xlu0 %253
  %vm255 = vcmp.lt.s32.totalorder %v98, 112
  %v256 = vsel %vm255, %v244, %v250
  %v257 = vsel %vm255, %v246, %v252
  %v258 = vsel %vm255, %v248, %v254
  %v259 = vsel %vm255, %v250, %v244
  %v260 = vsel %vm255, %v252, %v246
  %v261 = vsel %vm255, %v254, %v248
  %v262 = vmul.f32 %v256, %v66
  %v263 = vmul.f32 %v259, %v67
  %v264 = vmul.f32 %v257, %v68
  %v265 = vmul.f32 %v260, %v69
  %v266 = vmul.f32 %v258, %v70
  %v267 = vmul.f32 %v261, %v71
  %268 = vrot.lane.b32.xlu0 %v79, 111
  %v269 = vpop.permute.xlu0 %268
  %270 = vrot.lane.b32.xlu0 %v81, 111
  %v271 = vpop.permute.xlu0 %270
  %272 = vrot.lane.b32.xlu0 %v83, 111
  %v273 = vpop.permute.xlu0 %272
  %274 = vrot.lane.b32.xlu0 %v80, 111
  %v275 = vpop.permute.xlu0 %274
  %276 = vrot.lane.b32.xlu0 %v82, 111
  %v277 = vpop.permute.xlu0 %276
  %278 = vrot.lane.b32.xlu0 %v84, 111
  %v279 = vpop.permute.xlu0 %278
  %vm280 = vcmp.lt.s32.totalorder %v98, 111
  %v281 = vsel %vm280, %v269, %v275
  %v282 = vsel %vm280, %v271, %v277
  %v283 = vsel %vm280, %v273, %v279
  %v284 = vsel %vm280, %v275, %v269
  %v285 = vsel %vm280, %v277, %v271
  %v286 = vsel %vm280, %v279, %v273
  %v287 = vmul.f32 %v281, %v73
  %v288 = vmul.f32 %v284, %v74
  %v289 = vmul.f32 %v282, %v75
  %v290 = vmul.f32 %v285, %v76
  %v291 = vmul.f32 %v283, %v77
  %v292 = vmul.f32 %v286, %v78
  %v293 = vadd.f32 %v106, %v131
  %v294 = vadd.f32 %v107, %v132
  %v295 = vadd.f32 %v108, %v133
  %v296 = vadd.f32 %v109, %v134
  %v297 = vadd.f32 %v110, %v135
  %v298 = vadd.f32 %v111, %v136
  %v299 = vadd.f32 %v156, %v181
  %v300 = vadd.f32 %v157, %v182
  %v301 = vadd.f32 %v158, %v183
  %v302 = vadd.f32 %v159, %v184
  %v303 = vadd.f32 %v160, %v185
  %v304 = vadd.f32 %v161, %v186
  %v305 = vadd.f32 %v187, %v212
  %v306 = vadd.f32 %v188, %v213
  %v307 = vadd.f32 %v189, %v214
  %v308 = vadd.f32 %v190, %v215
  %v309 = vadd.f32 %v191, %v216
  %v310 = vadd.f32 %v192, %v217
  %v311 = vadd.f32 %v237, %v262
  %v312 = vadd.f32 %v238, %v263
  %v313 = vadd.f32 %v239, %v264
  %v314 = vadd.f32 %v240, %v265
  %v315 = vadd.f32 %v241, %v266
  %v316 = vadd.f32 %v242, %v267
  %v317 = vadd.f32 %v293, %v299
  %v318 = vadd.f32 %v294, %v300
  %v319 = vadd.f32 %v295, %v301
  %v320 = vadd.f32 %v296, %v302
  %v321 = vadd.f32 %v297, %v303
  %v322 = vadd.f32 %v298, %v304
  %v323 = vadd.f32 %v305, %v311
  %v324 = vadd.f32 %v306, %v312
  %v325 = vadd.f32 %v307, %v313
  %v326 = vadd.f32 %v308, %v314
  %v327 = vadd.f32 %v309, %v315
  %v328 = vadd.f32 %v310, %v316
  %v329 = vadd.f32 %v317, %v323
  %v330 = vadd.f32 %v318, %v324
  %v331 = vadd.f32 %v319, %v325
  %v332 = vadd.f32 %v320, %v326
  %v333 = vadd.f32 %v321, %v327
  %v334 = vadd.f32 %v322, %v328
  %v335 = vadd.f32 %v329, %v287
  %v336 = vadd.f32 %v330, %v288
  %v337 = vadd.f32 %v331, %v289
  %v338 = vadd.f32 %v332, %v290
  %v339 = vadd.f32 %v333, %v291
  %v340 = vadd.f32 %v334, %v292
  %v341 = vadd.f32 %v335, %v336
  %342 = vadd.xlane.f32.xlu0 %v341
  %v343 = vpop.xlane.xlu0 %342
  %v344 = vadd.f32 %v337, %v338
  %345 = vadd.xlane.f32.xlu0 %v344
  %v346 = vpop.xlane.xlu0 %345
  %v347 = vadd.f32 %v339, %v340
  %348 = vadd.xlane.f32.xlu0 %v347
  %v349 = vpop.xlane.xlu0 %348
  %v350 = vmul.f32 %v343, 0.00390625
  %v351 = vmul.f32 %v346, 0.00390625
  %v352 = vmul.f32 %v349, 0.00390625
  %v353 = vsub.f32 %v335, %v350
  %v354 = vsub.f32 %v336, %v350
  %v355 = vsub.f32 %v337, %v351
  %v356 = vsub.f32 %v338, %v351
  %v357 = vsub.f32 %v339, %v352
  %v358 = vsub.f32 %v340, %v352
  %v359 = vmul.f32 %v353, %v353
  %v360 = vmul.f32 %v354, %v354
  %v361 = vmul.f32 %v355, %v355
  %v362 = vmul.f32 %v356, %v356
  %v363 = vmul.f32 %v357, %v357
  %v364 = vmul.f32 %v358, %v358
  %v365 = vadd.f32 %v359, %v360
  %366 = vadd.xlane.f32.xlu0 %v365
  %v367 = vpop.xlane.xlu0 %366
  %v368 = vadd.f32 %v361, %v362
  %369 = vadd.xlane.f32.xlu0 %v368
  %v370 = vpop.xlane.xlu0 %369
  %v371 = vadd.f32 %v363, %v364
  %372 = vadd.xlane.f32.xlu0 %v371
  %v373 = vpop.xlane.xlu0 %372
  %v374 = vmul.f32 %v350, 0.0
  %v375 = vmul.f32 %v351, 0.0
  %v376 = vmul.f32 %v352, 0.0
  %v377 = vmul.f32 %v374, %v350
  %v378 = vmul.f32 %v375, %v351
  %v379 = vmul.f32 %v376, %v352
  %v380 = vsub.f32 %v367, %v377
  %v381 = vsub.f32 %v370, %v378
  %v382 = vsub.f32 %v373, %v379
  %v383 = vmul.f32 %v380, 0.003921569
  %v384 = vmul.f32 %v381, 0.003921569
  %v385 = vmul.f32 %v382, 0.003921569
  %v386 = vsub.f32 1.0, %v383
  %v387 = vsub.f32 1.0, %v384
  %v388 = vsub.f32 1.0, %v385
  %v389 = vmul.f32 %v14, %v386
  %v390 = vmul.f32 %v15, %v387
  %v391 = vmul.f32 %v16, %v388
  %393 = vset.pattern.permute.xlu0 0
  %394 = vperm.xlu0 %393, %v389
  %v395 = vpop.permute.xlu0 %394
  %398 = vset.pattern.permute.xlu0 0
  %399 = vperm.xlu0 %398, %v390
  %v400 = vpop.permute.xlu0 %399
  %403 = vset.pattern.permute.xlu0 0
  %404 = vperm.xlu0 %403, %v391
  %v405 = vpop.permute.xlu0 %404
  %v407 = vmul.f32 %v335, %v395
  %v408 = vmul.f32 %v336, %v395
  %v409 = vmul.f32 %v337, %v400
  %v410 = vmul.f32 %v338, %v400
  %v411 = vmul.f32 %v339, %v405
  %v412 = vmul.f32 %v340, %v405
  %413 = vst [vmem:[%s3] sm:$0xff] %v407
  %414 = vst [vmem:[%s3 + $0x8] sm:$0xff] %v408
  %415 = vst [vmem:[%s3 + $0x10] sm:$0xff] %v409
  %416 = vst [vmem:[%s3 + $0x18] sm:$0xff] %v410
  %417 = vst [vmem:[%s3 + $0x20] sm:$0xff] %v411
  %418 = vst [vmem:[%s3 + $0x28] sm:$0xff] %v412
  // Predicated region
  $region14: #{lite_gabor2_forward.1} parent=0 // pred_check
    _
  $region15: #{lite_gabor2_forward.1} parent=0 // pred_check_branch
    %420 = sbr.rel (0) target = $region17
  $region16: #{lite_gabor2_forward.1} parent=0 // pred_region
    _
  $region17: #{lite_gabor2_forward.1} parent=0 // pred_fallthru
    _
  // Predicated region
  $region18: #{lite_gabor2_forward.1} parent=0 // pred_check
    _
  $region19: #{lite_gabor2_forward.1} parent=0 // pred_check_branch
    %422 = sbr.rel (0) target = $region21
  $region20: #{lite_gabor2_forward.1} parent=0 // pred_region
    _
  $region21: #{lite_gabor2_forward.1} parent=0 // pred_fallthru
    _

</llo_original>
